<compile_context>
chip_gen: v6e
topology: v6e:2x2x1
jax: 0.10.0
libtpu: 0.0.40
codegen_flags: <defaults>
</compile_context>

<pallas_src>
import math

import jax
import jax.numpy as jnp
import numpy as np
from jax.experimental import pallas as pl
from jax.experimental.pallas import tpu as pltpu

# (ksize, dilation, padding) for conv_3x3, conv_5x5, dil_conv_3x3, dil_conv_5x5
CONV_CFGS = [(3, 1, 1), (5, 1, 2), (3, 2, 2), (5, 2, 4)]
PAD = 4        # max conv padding -> global halo applied once in the wrapper
TAIL = 8       # zero elements appended to each flattened phase plane (slack)
PHASES = [(0, 0), (0, 1), (1, 0), (1, 1)]


def _taps_by_phase():
    """Distinct conv tap offsets (in the 4-padded frame), grouped by parity."""
    offs = set()
    for k, d, p in CONV_CFGS:
        for kh in range(k):
            for kw in range(k):
                offs.add(((PAD - p) + kh * d, (PAD - p) + kw * d))
    by_phase = {ph: [] for ph in PHASES}
    for rc in sorted(offs):
        by_phase[(rc[0] % 2, rc[1] % 2)].append(rc)
    return by_phase


def _fold_params(mix_weights, params, in_ch):
    """Fold mixture weights into a phase-ordered (Co, Ktot) weight + bias."""
    by_phase = _taps_by_phase()
    out_ch = params[0][0].shape[0]
    mixw = mix_weights.astype(jnp.float32)
    tap_w = {rc: jnp.zeros((in_ch, out_ch), jnp.float32)
             for ph in PHASES for rc in by_phase[ph]}
    bias = jnp.zeros((out_ch,), jnp.float32)
    for i, ((k, d, p), (wt, bi)) in enumerate(zip(CONV_CFGS, params)):
        w_hwio = jnp.transpose(wt.astype(jnp.float32), (2, 3, 1, 0))  # (kh,kw,I,O)
        for kh in range(k):
            roff = (PAD - p) + kh * d
            for kw in range(k):
                coff = (PAD - p) + kw * d
                tap_w[(roff, coff)] = tap_w[(roff, coff)] + mixw[2 + i] * w_hwio[kh, kw]
        bias = bias + mixw[2 + i] * bi.astype(jnp.float32)
    # Column order must match the kernel's im2col fill order (phase-major).
    blocks = []
    for ph in PHASES:
        for rc in by_phase[ph]:
            blocks.append(tap_w[rc].T)                    # (Co, C)
    w_all = jnp.concatenate(blocks, axis=1)               # (Co, Ktot)
    scales = jnp.stack([mixw[0] * 0.25, mixw[1]])         # avg-pool, max-pool
    return by_phase, w_all, bias.reshape(1, out_ch, 1), scales


# ---------------------------------------------------------------------------
# Pallas kernel: pooling + in-VMEM im2col + one fused MXU matmul + crop/store.
# ---------------------------------------------------------------------------
def _make_kernel(by_phase, B, C, Co, Ho, Wo, Wp2, act):
    Mfull = Ho * Wp2                         # full-width (lane-dense) slab
    cstart = 2 * Wp2 + 2                     # pooling base offset
    Ktot = sum(len(by_phase[ph]) for ph in PHASES) * C

    def kernel(scales_ref,                                # SMEM (2,) f32
               p00, p01, p10, p11,                        # VMEM (B, C, Lpad) f32
               w_ref,                                     # VMEM (Co, Ktot) f32
               b_ref,                                     # VMEM (1, Co, 1) f32
               out_ref,                                   # VMEM (B, Co, Ho*Wo)
               relu_ref,                                  # VMEM (4, B, C, Lpad) f32
               g_ref):                                    # VMEM (B, Ktot, Mfull) f32
        phase_refs = {(0, 0): p00, (0, 1): p01, (1, 0): p10, (1, 1): p11}

        # --- pooling branches (no ReLU) + folded conv bias, f32 VPU ----------
        c00 = p00[:, :, cstart:cstart + Mfull]            # (B, C, Mfull)
        c01 = p01[:, :, cstart:cstart + Mfull]
        c10 = p10[:, :, cstart:cstart + Mfull]
        c11 = p11[:, :, cstart:cstart + Mfull]
        acc = (c00 + c01 + c10 + c11) * scales_ref[0] \
            + jnp.maximum(jnp.maximum(c00, c01),
                          jnp.maximum(c10, c11)) * scales_ref[1]
        acc = acc + b_ref[...]                            # (1, Co, 1) broadcast

        # --- hoisted ReLU: once per phase plane, staged in VMEM scratch ------
        for idx, ph in enumerate(PHASES):
            v = phase_refs[ph][...]
            relu_ref[idx] = jnp.maximum(v, 0.0) if act else v

        # --- build im2col block with contiguous shifted-slice copies ---------
        koff = 0
        for idx, ph in enumerate(PHASES):
            for (roff, coff) in by_phase[ph]:
                start = (roff // 2) * Wp2 + (coff // 2)
                g_ref[:, koff:koff + C, :] = relu_ref[idx, :, :, start:start + Mfull]
                koff += C

        # --- one fused MXU matmul over all folded taps (uninterrupted) -------
        w_b = jnp.broadcast_to(w_ref[...][None], (B, Co, Ktot))
        acc = acc + jax.lax.dot_general(
            w_b, g_ref[...],
            dimension_numbers=(((2,), (1,)), ((0,), (0,))),
            preferred_element_type=jnp.float32)           # (B, Co, Mfull)

        # --- crop garbage columns in-kernel; output is NCHW-ready ------------
        for y in range(Ho):
            out_ref[:, :, y * Wo:(y + 1) * Wo] = \
                acc[:, :, y * Wp2:y * Wp2 + Wo].astype(out_ref.dtype)

    return kernel


# ---------------------------------------------------------------------------
# Wrapper: MixedDown.forward(x, weights)
# ---------------------------------------------------------------------------
def mixed_down(x_nchw, mix_weights, params, act=True, batch_block=8,
               out_dtype=None):
    N, C, H, W = x_nchw.shape
    out_ch = params[0][0].shape[0]
    assert out_ch == C, "MixedDown weighted sum requires in_ch == out_ch"
    assert H % 2 == 0 and W % 2 == 0, "stride-2 MixedDown needs even H, W"
    Ho, Wo = H // 2, W // 2
    Hp2, Wp2 = Ho + PAD, Wo + PAD
    Lp = Hp2 * Wp2
    Lpad = Lp + TAIL
    Mfull = Ho * Wp2
    B = math.gcd(N, batch_block)          # batch block per grid step
    if out_dtype is None:
        out_dtype = x_nchw.dtype

    # Layout glue (single pass over the input): pad by the max halo once and
    # split into the 4 stride-2 phase planes; channels second, flattened
    # padded spatial LAST so every in-kernel access is lane-dense.
    xp = jnp.pad(x_nchw.astype(jnp.float32),
                 ((0, 0), (0, 0), (PAD, PAD), (PAD, PAD)))
    ph = (xp.reshape(N, C, Hp2, 2, Wp2, 2)
            .transpose(3, 5, 0, 1, 2, 4)                  # (2, 2, N, C, Hp2, Wp2)
            .reshape(2, 2, N, C, Lp))
    ph = jnp.pad(ph, ((0, 0), (0, 0), (0, 0), (0, 0), (0, TAIL)))
    phases = [ph[a, b] for a in range(2) for b in range(2)]   # 4 x (N, C, Lpad)

    # Fold mixture weights into conv weights / bias (tiny parameter tensors).
    by_phase, w_all, bias, scales = _fold_params(mix_weights, params, C)
    Ktot = w_all.shape[1]

    kernel = _make_kernel(by_phase, B, C, out_ch, Ho, Wo, Wp2, act)

    phase_spec = pl.BlockSpec((B, C, Lpad), lambda n: (n, 0, 0))
    in_specs = [
        pl.BlockSpec(memory_space=pltpu.MemorySpace.SMEM),      # pool scales
        phase_spec, phase_spec, phase_spec, phase_spec,         # phase planes
        pl.BlockSpec((out_ch, Ktot), lambda n: (0, 0)),         # folded weights
        pl.BlockSpec((1, out_ch, 1), lambda n: (0, 0, 0)),      # folded bias
    ]

    out = pl.pallas_call(
        kernel,
        out_shape=jax.ShapeDtypeStruct((N, out_ch, Ho * Wo), out_dtype),
        grid=(N // B,),
        in_specs=in_specs,
        out_specs=pl.BlockSpec((B, out_ch, Ho * Wo), lambda n: (n, 0, 0)),
        scratch_shapes=[
            pltpu.VMEM((4, B, C, Lpad), jnp.float32),           # ReLU'd phases
            pltpu.VMEM((B, Ktot, Mfull), jnp.float32),          # im2col block
        ],
        compiler_params=pltpu.CompilerParams(
            dimension_semantics=("parallel",),
            vmem_limit_bytes=32 * 1024 * 1024),
    )(scales, *phases, w_all, bias)

    # Already NCHW-ordered and cropped: only a free contiguous reshape remains.
    return out.reshape(N, out_ch, Ho, Wo)


# ---------------------------------------------------------------------------
# Parameter setup helper (deterministic spectral_norm power iteration).
# ---------------------------------------------------------------------------
def _spectral_norm(w, key, n_iter=1, eps=1e-12):
    out_ch = w.shape[0]
    w_mat = w.reshape(out_ch, -1)
    u = jax.random.normal(key, (out_ch,), jnp.float32)
    u = u / (jnp.linalg.norm(u) + eps)
    v = None
    for _ in range(n_iter):
        v = w_mat.T @ u
        v = v / (jnp.linalg.norm(v) + eps)
        u = w_mat @ v
        u = u / (jnp.linalg.norm(u) + eps)
    sigma = u @ (w_mat @ v)
    return w / sigma


# ---------------------------------------------------------------------------
# Reference: exact f32 mirror of the PyTorch forward (NCHW).
# ---------------------------------------------------------------------------
def ref_mixed_down(x, mix_weights, params, act):
    win = (1, 1, 2, 2)
    avg = jax.lax.reduce_window(x, 0.0, jax.lax.add, win, win, 'VALID') / 4.0
    mxp = jax.lax.reduce_window(x, -jnp.inf, jax.lax.max, win, win, 'VALID')
    outs = [avg, mxp]
    for (k, d, p), (wt, bi) in zip(CONV_CFGS, params):
        xin = jnp.maximum(x, 0.0) if act else x
        y = jax.lax.conv_general_dilated(
            xin, wt, window_strides=(2, 2), padding=[(p, p), (p, p)],
            rhs_dilation=(d, d), dimension_numbers=('NCHW', 'OIHW', 'NCHW'))
        outs.append(y + bi[None, :, None, None])
    return sum(mix_weights[i] * o for i, o in enumerate(outs))


if __name__ == "__main__":
    key = jax.random.PRNGKey(0)
    N, C, H, W = 2, 4, 16, 16          # stride-2 downsampling, in_ch == out_ch
    SN, ACT = True, True

    keys = jax.random.split(key, 2 + len(CONV_CFGS))
    x = jax.random.normal(keys[0], (N, C, H, W), jnp.float32)
    mixw = jax.nn.softmax(jax.random.normal(keys[1], (6,), jnp.float32))

    params = []
    for idx, (k, d, p) in enumerate(CONV_CFGS):
        wk, bk, uk = jax.random.split(keys[2 + idx], 3)
        fan_in = C * k * k
        bound = 1.0 / float(np.sqrt(fan_in))
        wt = jax.random.uniform(wk, (C, C, k, k), jnp.float32, -bound, bound)
        bi = jax.random.uniform(bk, (C,), jnp.float32, -bound, bound)
        if SN:
            wt = _spectral_norm(wt, uk)
        params.append((wt, bi))

    y = mixed_down(x, mixw, params, act=ACT)
    jax.block_until_ready(y)

    # End-to-end check vs the exact f32 PyTorch-equivalent forward.  The
    # kernel streams/accumulates f32; tolerance covers MXU bf16-pass rounding.
    y_ref = ref_mixed_down(x, mixw, params, ACT)
    np.testing.assert_allclose(np.asarray(y), np.asarray(y_ref),
                               rtol=1e-2, atol=1e-2)
    print("KERNEL_OK")
</pallas_src>

<mosaic_0001>
module attributes {stable_mosaic.version = 11 : i64} {
  func.func @kernel(%arg0: i32, %arg1: memref<2xf32, #tpu.memory_space<smem>>, %arg2: memref<2x4x152xf32, #tpu.memory_space<vmem>>, %arg3: memref<2x4x152xf32, #tpu.memory_space<vmem>>, %arg4: memref<2x4x152xf32, #tpu.memory_space<vmem>>, %arg5: memref<2x4x152xf32, #tpu.memory_space<vmem>>, %arg6: memref<4x164xf32, #tpu.memory_space<vmem>>, %arg7: memref<1x4x1xf32, #tpu.memory_space<vmem>>, %arg8: memref<2x4x64xf32, #tpu.memory_space<vmem>>, %arg9: memref<4x2x4x152xf32, #tpu.memory_space<vmem>>, %arg10: memref<2x164x96xf32, #tpu.memory_space<vmem>>) attributes {dimension_semantics = [#tpu.dimension_semantics<parallel>], iteration_bounds = array<i64: 1>, scalar_prefetch = 0 : i64, scratch_operands = 2 : i64, tpu.core_type = #tpu.core_type<tc>, window_params = [{transform_indices = @transform_0, window_bounds = array<i64: 2>}, {transform_indices = @transform_1, window_bounds = array<i64: 2, 4, 152>}, {transform_indices = @transform_2, window_bounds = array<i64: 2, 4, 152>}, {transform_indices = @transform_3, window_bounds = array<i64: 2, 4, 152>}, {transform_indices = @transform_4, window_bounds = array<i64: 2, 4, 152>}, {pipeline_mode = #tpu.pipeline_mode<synchronous>, transform_indices = @transform_5, window_bounds = array<i64: 4, 164>}, {pipeline_mode = #tpu.pipeline_mode<synchronous>, transform_indices = @transform_6, window_bounds = array<i64: 1, 4, 1>}, {transform_indices = @transform_7, window_bounds = array<i64: 2, 4, 64>}]} {
    %c0 = arith.constant 0 : index
    %c0_0 = arith.constant 0 : index
    %c26 = arith.constant 26 : index
    %0 = vector.load %arg2[%c0, %c0_0, %c26] : memref<2x4x152xf32, #tpu.memory_space<vmem>>, vector<2x4x96xf32>
    %c0_1 = arith.constant 0 : index
    %c0_2 = arith.constant 0 : index
    %c26_3 = arith.constant 26 : index
    %1 = vector.load %arg3[%c0_1, %c0_2, %c26_3] : memref<2x4x152xf32, #tpu.memory_space<vmem>>, vector<2x4x96xf32>
    %c0_4 = arith.constant 0 : index
    %c0_5 = arith.constant 0 : index
    %c26_6 = arith.constant 26 : index
    %2 = vector.load %arg4[%c0_4, %c0_5, %c26_6] : memref<2x4x152xf32, #tpu.memory_space<vmem>>, vector<2x4x96xf32>
    %c0_7 = arith.constant 0 : index
    %c0_8 = arith.constant 0 : index
    %c26_9 = arith.constant 26 : index
    %3 = vector.load %arg5[%c0_7, %c0_8, %c26_9] : memref<2x4x152xf32, #tpu.memory_space<vmem>>, vector<2x4x96xf32>
    %4 = arith.addf %0, %1 : vector<2x4x96xf32>
    %5 = arith.addf %4, %2 : vector<2x4x96xf32>
    %6 = arith.addf %5, %3 : vector<2x4x96xf32>
    %c0_10 = arith.constant 0 : index
    %7 = memref.load %arg1[%c0_10] : memref<2xf32, #tpu.memory_space<smem>>
    %8 = vector.broadcast %7 : f32 to vector<2x4x96xf32>
    %9 = arith.mulf %6, %8 : vector<2x4x96xf32>
    %10 = arith.maximumf %0, %1 : vector<2x4x96xf32>
    %11 = arith.maximumf %2, %3 : vector<2x4x96xf32>
    %12 = arith.maximumf %10, %11 : vector<2x4x96xf32>
    %c1 = arith.constant 1 : index
    %13 = memref.load %arg1[%c1] : memref<2xf32, #tpu.memory_space<smem>>
    %14 = vector.broadcast %13 : f32 to vector<2x4x96xf32>
    %15 = arith.mulf %12, %14 : vector<2x4x96xf32>
    %16 = arith.addf %9, %15 : vector<2x4x96xf32>
    %c0_11 = arith.constant 0 : index
    %c0_12 = arith.constant 0 : index
    %c0_13 = arith.constant 0 : index
    %17 = vector.load %arg7[%c0_11, %c0_12, %c0_13] : memref<1x4x1xf32, #tpu.memory_space<vmem>>, vector<1x4x1xf32>
    %18 = vector.broadcast %17 : vector<1x4x1xf32> to vector<2x4x96xf32>
    %19 = arith.addf %16, %18 : vector<2x4x96xf32>
    %c0_14 = arith.constant 0 : index
    %c0_15 = arith.constant 0 : index
    %c0_16 = arith.constant 0 : index
    %20 = vector.load %arg2[%c0_14, %c0_15, %c0_16] : memref<2x4x152xf32, #tpu.memory_space<vmem>>, vector<2x4x152xf32>
    %cst = arith.constant 0.000000e+00 : f32
    %21 = vector.broadcast %cst : f32 to vector<2x4x152xf32>
    %22 = arith.maximumf %20, %21 : vector<2x4x152xf32>
    %c0_17 = arith.constant 0 : index
    %c0_18 = arith.constant 0 : index
    %c0_19 = arith.constant 0 : index
    %c0_20 = arith.constant 0 : index
    %23 = vector.load %arg9[%c0_17, %c0_18, %c0_19, %c0_20] : memref<4x2x4x152xf32, #tpu.memory_space<vmem>>, vector<1x2x4x152xf32>
    %24 = vector.shape_cast %23 : vector<1x2x4x152xf32> to vector<2x4x152xf32>
    %25 = vector.shape_cast %22 : vector<2x4x152xf32> to vector<1x2x4x152xf32>
    tpu.vector_store %arg9[%c0_17, %c0_18, %c0_19, %c0_20], %25 {strides = array<i32>} : memref<4x2x4x152xf32, #tpu.memory_space<vmem>>, vector<1x2x4x152xf32>,
    %c0_21 = arith.constant 0 : index
    %c0_22 = arith.constant 0 : index
    %c0_23 = arith.constant 0 : index
    %26 = vector.load %arg3[%c0_21, %c0_22, %c0_23] : memref<2x4x152xf32, #tpu.memory_space<vmem>>, vector<2x4x152xf32>
    %cst_24 = arith.constant 0.000000e+00 : f32
    %27 = vector.broadcast %cst_24 : f32 to vector<2x4x152xf32>
    %28 = arith.maximumf %26, %27 : vector<2x4x152xf32>
    %c1_25 = arith.constant 1 : index
    %c0_26 = arith.constant 0 : index
    %c0_27 = arith.constant 0 : index
    %c0_28 = arith.constant 0 : index
    %29 = vector.load %arg9[%c1_25, %c0_26, %c0_27, %c0_28] : memref<4x2x4x152xf32, #tpu.memory_space<vmem>>, vector<1x2x4x152xf32>
    %30 = vector.shape_cast %29 : vector<1x2x4x152xf32> to vector<2x4x152xf32>
    %31 = vector.shape_cast %28 : vector<2x4x152xf32> to vector<1x2x4x152xf32>
    tpu.vector_store %arg9[%c1_25, %c0_26, %c0_27, %c0_28], %31 {strides = array<i32>} : memref<4x2x4x152xf32, #tpu.memory_space<vmem>>, vector<1x2x4x152xf32>,
    %c0_29 = arith.constant 0 : index
    %c0_30 = arith.constant 0 : index
    %c0_31 = arith.constant 0 : index
    %32 = vector.load %arg4[%c0_29, %c0_30, %c0_31] : memref<2x4x152xf32, #tpu.memory_space<vmem>>, vector<2x4x152xf32>
    %cst_32 = arith.constant 0.000000e+00 : f32
    %33 = vector.broadcast %cst_32 : f32 to vector<2x4x152xf32>
    %34 = arith.maximumf %32, %33 : vector<2x4x152xf32>
    %c2 = arith.constant 2 : index
    %c0_33 = arith.constant 0 : index
    %c0_34 = arith.constant 0 : index
    %c0_35 = arith.constant 0 : index
    %35 = vector.load %arg9[%c2, %c0_33, %c0_34, %c0_35] : memref<4x2x4x152xf32, #tpu.memory_space<vmem>>, vector<1x2x4x152xf32>
    %36 = vector.shape_cast %35 : vector<1x2x4x152xf32> to vector<2x4x152xf32>
    %37 = vector.shape_cast %34 : vector<2x4x152xf32> to vector<1x2x4x152xf32>
    tpu.vector_store %arg9[%c2, %c0_33, %c0_34, %c0_35], %37 {strides = array<i32>} : memref<4x2x4x152xf32, #tpu.memory_space<vmem>>, vector<1x2x4x152xf32>,
    %c0_36 = arith.constant 0 : index
    %c0_37 = arith.constant 0 : index
    %c0_38 = arith.constant 0 : index
    %38 = vector.load %arg5[%c0_36, %c0_37, %c0_38] : memref<2x4x152xf32, #tpu.memory_space<vmem>>, vector<2x4x152xf32>
    %cst_39 = arith.constant 0.000000e+00 : f32
    %39 = vector.broadcast %cst_39 : f32 to vector<2x4x152xf32>
    %40 = arith.maximumf %38, %39 : vector<2x4x152xf32>
    %c3 = arith.constant 3 : index
    %c0_40 = arith.constant 0 : index
    %c0_41 = arith.constant 0 : index
    %c0_42 = arith.constant 0 : index
    %41 = vector.load %arg9[%c3, %c0_40, %c0_41, %c0_42] : memref<4x2x4x152xf32, #tpu.memory_space<vmem>>, vector<1x2x4x152xf32>
    %42 = vector.shape_cast %41 : vector<1x2x4x152xf32> to vector<2x4x152xf32>
    %43 = vector.shape_cast %40 : vector<2x4x152xf32> to vector<1x2x4x152xf32>
    tpu.vector_store %arg9[%c3, %c0_40, %c0_41, %c0_42], %43 {strides = array<i32>} : memref<4x2x4x152xf32, #tpu.memory_space<vmem>>, vector<1x2x4x152xf32>,
    %c0_43 = arith.constant 0 : index
    %c0_44 = arith.constant 0 : index
    %c0_45 = arith.constant 0 : index
    %c0_46 = arith.constant 0 : index
    %44 = vector.load %arg9[%c0_43, %c0_44, %c0_45, %c0_46] : memref<4x2x4x152xf32, #tpu.memory_space<vmem>>, vector<1x2x4x96xf32>
    %45 = vector.shape_cast %44 : vector<1x2x4x96xf32> to vector<2x4x96xf32>
    %c0_47 = arith.constant 0 : index
    %c0_48 = arith.constant 0 : index
    %c0_49 = arith.constant 0 : index
    %46 = vector.load %arg10[%c0_47, %c0_48, %c0_49] : memref<2x164x96xf32, #tpu.memory_space<vmem>>, vector<2x4x96xf32>
    tpu.vector_store %arg10[%c0_47, %c0_48, %c0_49], %45 {strides = array<i32>} : memref<2x164x96xf32, #tpu.memory_space<vmem>>, vector<2x4x96xf32>,
    %c0_50 = arith.constant 0 : index
    %c0_51 = arith.constant 0 : index
    %c0_52 = arith.constant 0 : index
    %c1_53 = arith.constant 1 : index
    %47 = vector.load %arg9[%c0_50, %c0_51, %c0_52, %c1_53] : memref<4x2x4x152xf32, #tpu.memory_space<vmem>>, vector<1x2x4x96xf32>
    %48 = vector.shape_cast %47 : vector<1x2x4x96xf32> to vector<2x4x96xf32>
    %c0_54 = arith.constant 0 : index
    %c4 = arith.constant 4 : index
    %c0_55 = arith.constant 0 : index
    %49 = vector.load %arg10[%c0_54, %c4, %c0_55] : memref<2x164x96xf32, #tpu.memory_space<vmem>>, vector<2x4x96xf32>
    tpu.vector_store %arg10[%c0_54, %c4, %c0_55], %48 {strides = array<i32>} : memref<2x164x96xf32, #tpu.memory_space<vmem>>, vector<2x4x96xf32>,
    %c0_56 = arith.constant 0 : index
    %c0_57 = arith.constant 0 : index
    %c0_58 = arith.constant 0 : index
    %c2_59 = arith.constant 2 : index
    %50 = vector.load %arg9[%c0_56, %c0_57, %c0_58, %c2_59] : memref<4x2x4x152xf32, #tpu.memory_space<vmem>>, vector<1x2x4x96xf32>
    %51 = vector.shape_cast %50 : vector<1x2x4x96xf32> to vector<2x4x96xf32>
    %c0_60 = arith.constant 0 : index
    %c8 = arith.constant 8 : index
    %c0_61 = arith.constant 0 : index
    %52 = vector.load %arg10[%c0_60, %c8, %c0_61] : memref<2x164x96xf32, #tpu.memory_space<vmem>>, vector<2x4x96xf32>
    tpu.vector_store %arg10[%c0_60, %c8, %c0_61], %51 {strides = array<i32>} : memref<2x164x96xf32, #tpu.memory_space<vmem>>, vector<2x4x96xf32>,
    %c0_62 = arith.constant 0 : index
    %c0_63 = arith.constant 0 : index
    %c0_64 = arith.constant 0 : index
    %c3_65 = arith.constant 3 : index
    %53 = vector.load %arg9[%c0_62, %c0_63, %c0_64, %c3_65] : memref<4x2x4x152xf32, #tpu.memory_space<vmem>>, vector<1x2x4x96xf32>
    %54 = vector.shape_cast %53 : vector<1x2x4x96xf32> to vector<2x4x96xf32>
    %c0_66 = arith.constant 0 : index
    %c12 = arith.constant 12 : index
    %c0_67 = arith.constant 0 : index
    %55 = vector.load %arg10[%c0_66, %c12, %c0_67] : memref<2x164x96xf32, #tpu.memory_space<vmem>>, vector<2x4x96xf32>
    tpu.vector_store %arg10[%c0_66, %c12, %c0_67], %54 {strides = array<i32>} : memref<2x164x96xf32, #tpu.memory_space<vmem>>, vector<2x4x96xf32>,
    %c0_68 = arith.constant 0 : index
    %c0_69 = arith.constant 0 : index
    %c0_70 = arith.constant 0 : index
    %c4_71 = arith.constant 4 : index
    %56 = vector.load %arg9[%c0_68, %c0_69, %c0_70, %c4_71] : memref<4x2x4x152xf32, #tpu.memory_space<vmem>>, vector<1x2x4x96xf32>
    %57 = vector.shape_cast %56 : vector<1x2x4x96xf32> to vector<2x4x96xf32>
    %c0_72 = arith.constant 0 : index
    %c16 = arith.constant 16 : index
    %c0_73 = arith.constant 0 : index
    %58 = vector.load %arg10[%c0_72, %c16, %c0_73] : memref<2x164x96xf32, #tpu.memory_space<vmem>>, vector<2x4x96xf32>
    tpu.vector_store %arg10[%c0_72, %c16, %c0_73], %57 {strides = array<i32>} : memref<2x164x96xf32, #tpu.memory_space<vmem>>, vector<2x4x96xf32>,
    %c0_74 = arith.constant 0 : index
    %c0_75 = arith.constant 0 : index
    %c0_76 = arith.constant 0 : index
    %c12_77 = arith.constant 12 : index
    %59 = vector.load %arg9[%c0_74, %c0_75, %c0_76, %c12_77] : memref<4x2x4x152xf32, #tpu.memory_space<vmem>>, vector<1x2x4x96xf32>
    %60 = vector.shape_cast %59 : vector<1x2x4x96xf32> to vector<2x4x96xf32>
    %c0_78 = arith.constant 0 : index
    %c20 = arith.constant 20 : index
    %c0_79 = arith.constant 0 : index
    %61 = vector.load %arg10[%c0_78, %c20, %c0_79] : memref<2x164x96xf32, #tpu.memory_space<vmem>>, vector<2x4x96xf32>
    tpu.vector_store %arg10[%c0_78, %c20, %c0_79], %60 {strides = array<i32>} : memref<2x164x96xf32, #tpu.memory_space<vmem>>, vector<2x4x96xf32>,
    %c0_80 = arith.constant 0 : index
    %c0_81 = arith.constant 0 : index
    %c0_82 = arith.constant 0 : index
    %c13 = arith.constant 13 : index
    %62 = vector.load %arg9[%c0_80, %c0_81, %c0_82, %c13] : memref<4x2x4x152xf32, #tpu.memory_space<vmem>>, vector<1x2x4x96xf32>
    %63 = vector.shape_cast %62 : vector<1x2x4x96xf32> to vector<2x4x96xf32>
    %c0_83 = arith.constant 0 : index
    %c24 = arith.constant 24 : index
    %c0_84 = arith.constant 0 : index
    %64 = vector.load %arg10[%c0_83, %c24, %c0_84] : memref<2x164x96xf32, #tpu.memory_space<vmem>>, vector<2x4x96xf32>
    tpu.vector_store %arg10[%c0_83, %c24, %c0_84], %63 {strides = array<i32>} : memref<2x164x96xf32, #tpu.memory_space<vmem>>, vector<2x4x96xf32>,
    %c0_85 = arith.constant 0 : index
    %c0_86 = arith.constant 0 : index
    %c0_87 = arith.constant 0 : index
    %c14 = arith.constant 14 : index
    %65 = vector.load %arg9[%c0_85, %c0_86, %c0_87, %c14] : memref<4x2x4x152xf32, #tpu.memory_space<vmem>>, vector<1x2x4x96xf32>
    %66 = vector.shape_cast %65 : vector<1x2x4x96xf32> to vector<2x4x96xf32>
    %c0_88 = arith.constant 0 : index
    %c28 = arith.constant 28 : index
    %c0_89 = arith.constant 0 : index
    %67 = vector.load %arg10[%c0_88, %c28, %c0_89] : memref<2x164x96xf32, #tpu.memory_space<vmem>>, vector<2x4x96xf32>
    tpu.vector_store %arg10[%c0_88, %c28, %c0_89], %66 {strides = array<i32>} : memref<2x164x96xf32, #tpu.memory_space<vmem>>, vector<2x4x96xf32>,
    %c0_90 = arith.constant 0 : index
    %c0_91 = arith.constant 0 : index
    %c0_92 = arith.constant 0 : index
    %c15 = arith.constant 15 : index
    %68 = vector.load %arg9[%c0_90, %c0_91, %c0_92, %c15] : memref<4x2x4x152xf32, #tpu.memory_space<vmem>>, vector<1x2x4x96xf32>
    %69 = vector.shape_cast %68 : vector<1x2x4x96xf32> to vector<2x4x96xf32>
    %c0_93 = arith.constant 0 : index
    %c32 = arith.constant 32 : index
    %c0_94 = arith.constant 0 : index
    %70 = vector.load %arg10[%c0_93, %c32, %c0_94] : memref<2x164x96xf32, #tpu.memory_space<vmem>>, vector<2x4x96xf32>
    tpu.vector_store %arg10[%c0_93, %c32, %c0_94], %69 {strides = array<i32>} : memref<2x164x96xf32, #tpu.memory_space<vmem>>, vector<2x4x96xf32>,
    %c0_95 = arith.constant 0 : index
    %c0_96 = arith.constant 0 : index
    %c0_97 = arith.constant 0 : index
    %c16_98 = arith.constant 16 : index
    %71 = vector.load %arg9[%c0_95, %c0_96, %c0_97, %c16_98] : memref<4x2x4x152xf32, #tpu.memory_space<vmem>>, vector<1x2x4x96xf32>
    %72 = vector.shape_cast %71 : vector<1x2x4x96xf32> to vector<2x4x96xf32>
    %c0_99 = arith.constant 0 : index
    %c36 = arith.constant 36 : index
    %c0_100 = arith.constant 0 : index
    %73 = vector.load %arg10[%c0_99, %c36, %c0_100] : memref<2x164x96xf32, #tpu.memory_space<vmem>>, vector<2x4x96xf32>
    tpu.vector_store %arg10[%c0_99, %c36, %c0_100], %72 {strides = array<i32>} : memref<2x164x96xf32, #tpu.memory_space<vmem>>, vector<2x4x96xf32>,
    %c0_101 = arith.constant 0 : index
    %c0_102 = arith.constant 0 : index
    %c0_103 = arith.constant 0 : index
    %c24_104 = arith.constant 24 : index
    %74 = vector.load %arg9[%c0_101, %c0_102, %c0_103, %c24_104] : memref<4x2x4x152xf32, #tpu.memory_space<vmem>>, vector<1x2x4x96xf32>
    %75 = vector.shape_cast %74 : vector<1x2x4x96xf32> to vector<2x4x96xf32>
    %c0_105 = arith.constant 0 : index
    %c40 = arith.constant 40 : index
    %c0_106 = arith.constant 0 : index
    %76 = vector.load %arg10[%c0_105, %c40, %c0_106] : memref<2x164x96xf32, #tpu.memory_space<vmem>>, vector<2x4x96xf32>
    tpu.vector_store %arg10[%c0_105, %c40, %c0_106], %75 {strides = array<i32>} : memref<2x164x96xf32, #tpu.memory_space<vmem>>, vector<2x4x96xf32>,
    %c0_107 = arith.constant 0 : index
    %c0_108 = arith.constant 0 : index
    %c0_109 = arith.constant 0 : index
    %c25 = arith.constant 25 : index
    %77 = vector.load %arg9[%c0_107, %c0_108, %c0_109, %c25] : memref<4x2x4x152xf32, #tpu.memory_space<vmem>>, vector<1x2x4x96xf32>
    %78 = vector.shape_cast %77 : vector<1x2x4x96xf32> to vector<2x4x96xf32>
    %c0_110 = arith.constant 0 : index
    %c44 = arith.constant 44 : index
    %c0_111 = arith.constant 0 : index
    %79 = vector.load %arg10[%c0_110, %c44, %c0_111] : memref<2x164x96xf32, #tpu.memory_space<vmem>>, vector<2x4x96xf32>
    tpu.vector_store %arg10[%c0_110, %c44, %c0_111], %78 {strides = array<i32>} : memref<2x164x96xf32, #tpu.memory_space<vmem>>, vector<2x4x96xf32>,
    %c0_112 = arith.constant 0 : index
    %c0_113 = arith.constant 0 : index
    %c0_114 = arith.constant 0 : index
    %c26_115 = arith.constant 26 : index
    %80 = vector.load %arg9[%c0_112, %c0_113, %c0_114, %c26_115] : memref<4x2x4x152xf32, #tpu.memory_space<vmem>>, vector<1x2x4x96xf32>
    %81 = vector.shape_cast %80 : vector<1x2x4x96xf32> to vector<2x4x96xf32>
    %c0_116 = arith.constant 0 : index
    %c48 = arith.constant 48 : index
    %c0_117 = arith.constant 0 : index
    %82 = vector.load %arg10[%c0_116, %c48, %c0_117] : memref<2x164x96xf32, #tpu.memory_space<vmem>>, vector<2x4x96xf32>
    tpu.vector_store %arg10[%c0_116, %c48, %c0_117], %81 {strides = array<i32>} : memref<2x164x96xf32, #tpu.memory_space<vmem>>, vector<2x4x96xf32>,
    %c0_118 = arith.constant 0 : index
    %c0_119 = arith.constant 0 : index
    %c0_120 = arith.constant 0 : index
    %c27 = arith.constant 27 : index
    %83 = vector.load %arg9[%c0_118, %c0_119, %c0_120, %c27] : memref<4x2x4x152xf32, #tpu.memory_space<vmem>>, vector<1x2x4x96xf32>
    %84 = vector.shape_cast %83 : vector<1x2x4x96xf32> to vector<2x4x96xf32>
    %c0_121 = arith.constant 0 : index
    %c52 = arith.constant 52 : index
    %c0_122 = arith.constant 0 : index
    %85 = vector.load %arg10[%c0_121, %c52, %c0_122] : memref<2x164x96xf32, #tpu.memory_space<vmem>>, vector<2x4x96xf32>
    tpu.vector_store %arg10[%c0_121, %c52, %c0_122], %84 {strides = array<i32>} : memref<2x164x96xf32, #tpu.memory_space<vmem>>, vector<2x4x96xf32>,
    %c0_123 = arith.constant 0 : index
    %c0_124 = arith.constant 0 : index
    %c0_125 = arith.constant 0 : index
    %c28_126 = arith.constant 28 : index
    %86 = vector.load %arg9[%c0_123, %c0_124, %c0_125, %c28_126] : memref<4x2x4x152xf32, #tpu.memory_space<vmem>>, vector<1x2x4x96xf32>
    %87 = vector.shape_cast %86 : vector<1x2x4x96xf32> to vector<2x4x96xf32>
    %c0_127 = arith.constant 0 : index
    %c56 = arith.constant 56 : index
    %c0_128 = arith.constant 0 : index
    %88 = vector.load %arg10[%c0_127, %c56, %c0_128] : memref<2x164x96xf32, #tpu.memory_space<vmem>>, vector<2x4x96xf32>
    tpu.vector_store %arg10[%c0_127, %c56, %c0_128], %87 {strides = array<i32>} : memref<2x164x96xf32, #tpu.memory_space<vmem>>, vector<2x4x96xf32>,
    %c0_129 = arith.constant 0 : index
    %c0_130 = arith.constant 0 : index
    %c0_131 = arith.constant 0 : index
    %c36_132 = arith.constant 36 : index
    %89 = vector.load %arg9[%c0_129, %c0_130, %c0_131, %c36_132] : memref<4x2x4x152xf32, #tpu.memory_space<vmem>>, vector<1x2x4x96xf32>
    %90 = vector.shape_cast %89 : vector<1x2x4x96xf32> to vector<2x4x96xf32>
    %c0_133 = arith.constant 0 : index
    %c60 = arith.constant 60 : index
    %c0_134 = arith.constant 0 : index
    %91 = vector.load %arg10[%c0_133, %c60, %c0_134] : memref<2x164x96xf32, #tpu.memory_space<vmem>>, vector<2x4x96xf32>
    tpu.vector_store %arg10[%c0_133, %c60, %c0_134], %90 {strides = array<i32>} : memref<2x164x96xf32, #tpu.memory_space<vmem>>, vector<2x4x96xf32>,
    %c0_135 = arith.constant 0 : index
    %c0_136 = arith.constant 0 : index
    %c0_137 = arith.constant 0 : index
    %c37 = arith.constant 37 : index
    %92 = vector.load %arg9[%c0_135, %c0_136, %c0_137, %c37] : memref<4x2x4x152xf32, #tpu.memory_space<vmem>>, vector<1x2x4x96xf32>
    %93 = vector.shape_cast %92 : vector<1x2x4x96xf32> to vector<2x4x96xf32>
    %c0_138 = arith.constant 0 : index
    %c64 = arith.constant 64 : index
    %c0_139 = arith.constant 0 : index
    %94 = vector.load %arg10[%c0_138, %c64, %c0_139] : memref<2x164x96xf32, #tpu.memory_space<vmem>>, vector<2x4x96xf32>
    tpu.vector_store %arg10[%c0_138, %c64, %c0_139], %93 {strides = array<i32>} : memref<2x164x96xf32, #tpu.memory_space<vmem>>, vector<2x4x96xf32>,
    %c0_140 = arith.constant 0 : index
    %c0_141 = arith.constant 0 : index
    %c0_142 = arith.constant 0 : index
    %c38 = arith.constant 38 : index
    %95 = vector.load %arg9[%c0_140, %c0_141, %c0_142, %c38] : memref<4x2x4x152xf32, #tpu.memory_space<vmem>>, vector<1x2x4x96xf32>
    %96 = vector.shape_cast %95 : vector<1x2x4x96xf32> to vector<2x4x96xf32>
    %c0_143 = arith.constant 0 : index
    %c68 = arith.constant 68 : index
    %c0_144 = arith.constant 0 : index
    %97 = vector.load %arg10[%c0_143, %c68, %c0_144] : memref<2x164x96xf32, #tpu.memory_space<vmem>>, vector<2x4x96xf32>
    tpu.vector_store %arg10[%c0_143, %c68, %c0_144], %96 {strides = array<i32>} : memref<2x164x96xf32, #tpu.memory_space<vmem>>, vector<2x4x96xf32>,
    %c0_145 = arith.constant 0 : index
    %c0_146 = arith.constant 0 : index
    %c0_147 = arith.constant 0 : index
    %c39 = arith.constant 39 : index
    %98 = vector.load %arg9[%c0_145, %c0_146, %c0_147, %c39] : memref<4x2x4x152xf32, #tpu.memory_space<vmem>>, vector<1x2x4x96xf32>
    %99 = vector.shape_cast %98 : vector<1x2x4x96xf32> to vector<2x4x96xf32>
    %c0_148 = arith.constant 0 : index
    %c72 = arith.constant 72 : index
    %c0_149 = arith.constant 0 : index
    %100 = vector.load %arg10[%c0_148, %c72, %c0_149] : memref<2x164x96xf32, #tpu.memory_space<vmem>>, vector<2x4x96xf32>
    tpu.vector_store %arg10[%c0_148, %c72, %c0_149], %99 {strides = array<i32>} : memref<2x164x96xf32, #tpu.memory_space<vmem>>, vector<2x4x96xf32>,
    %c0_150 = arith.constant 0 : index
    %c0_151 = arith.constant 0 : index
    %c0_152 = arith.constant 0 : index
    %c40_153 = arith.constant 40 : index
    %101 = vector.load %arg9[%c0_150, %c0_151, %c0_152, %c40_153] : memref<4x2x4x152xf32, #tpu.memory_space<vmem>>, vector<1x2x4x96xf32>
    %102 = vector.shape_cast %101 : vector<1x2x4x96xf32> to vector<2x4x96xf32>
    %c0_154 = arith.constant 0 : index
    %c76 = arith.constant 76 : index
    %c0_155 = arith.constant 0 : index
    %103 = vector.load %arg10[%c0_154, %c76, %c0_155] : memref<2x164x96xf32, #tpu.memory_space<vmem>>, vector<2x4x96xf32>
    tpu.vector_store %arg10[%c0_154, %c76, %c0_155], %102 {strides = array<i32>} : memref<2x164x96xf32, #tpu.memory_space<vmem>>, vector<2x4x96xf32>,
    %c0_156 = arith.constant 0 : index
    %c0_157 = arith.constant 0 : index
    %c0_158 = arith.constant 0 : index
    %c48_159 = arith.constant 48 : index
    %104 = vector.load %arg9[%c0_156, %c0_157, %c0_158, %c48_159] : memref<4x2x4x152xf32, #tpu.memory_space<vmem>>, vector<1x2x4x96xf32>
    %105 = vector.shape_cast %104 : vector<1x2x4x96xf32> to vector<2x4x96xf32>
    %c0_160 = arith.constant 0 : index
    %c80 = arith.constant 80 : index
    %c0_161 = arith.constant 0 : index
    %106 = vector.load %arg10[%c0_160, %c80, %c0_161] : memref<2x164x96xf32, #tpu.memory_space<vmem>>, vector<2x4x96xf32>
    tpu.vector_store %arg10[%c0_160, %c80, %c0_161], %105 {strides = array<i32>} : memref<2x164x96xf32, #tpu.memory_space<vmem>>, vector<2x4x96xf32>,
    %c0_162 = arith.constant 0 : index
    %c0_163 = arith.constant 0 : index
    %c0_164 = arith.constant 0 : index
    %c49 = arith.constant 49 : index
    %107 = vector.load %arg9[%c0_162, %c0_163, %c0_164, %c49] : memref<4x2x4x152xf32, #tpu.memory_space<vmem>>, vector<1x2x4x96xf32>
    %108 = vector.shape_cast %107 : vector<1x2x4x96xf32> to vector<2x4x96xf32>
    %c0_165 = arith.constant 0 : index
    %c84 = arith.constant 84 : index
    %c0_166 = arith.constant 0 : index
    %109 = vector.load %arg10[%c0_165, %c84, %c0_166] : memref<2x164x96xf32, #tpu.memory_space<vmem>>, vector<2x4x96xf32>
    tpu.vector_store %arg10[%c0_165, %c84, %c0_166], %108 {strides = array<i32>} : memref<2x164x96xf32, #tpu.memory_space<vmem>>, vector<2x4x96xf32>,
    %c0_167 = arith.constant 0 : index
    %c0_168 = arith.constant 0 : index
    %c0_169 = arith.constant 0 : index
    %c50 = arith.constant 50 : index
    %110 = vector.load %arg9[%c0_167, %c0_168, %c0_169, %c50] : memref<4x2x4x152xf32, #tpu.memory_space<vmem>>, vector<1x2x4x96xf32>
    %111 = vector.shape_cast %110 : vector<1x2x4x96xf32> to vector<2x4x96xf32>
    %c0_170 = arith.constant 0 : index
    %c88 = arith.constant 88 : index
    %c0_171 = arith.constant 0 : index
    %112 = vector.load %arg10[%c0_170, %c88, %c0_171] : memref<2x164x96xf32, #tpu.memory_space<vmem>>, vector<2x4x96xf32>
    tpu.vector_store %arg10[%c0_170, %c88, %c0_171], %111 {strides = array<i32>} : memref<2x164x96xf32, #tpu.memory_space<vmem>>, vector<2x4x96xf32>,
    %c0_172 = arith.constant 0 : index
    %c0_173 = arith.constant 0 : index
    %c0_174 = arith.constant 0 : index
    %c51 = arith.constant 51 : index
    %113 = vector.load %arg9[%c0_172, %c0_173, %c0_174, %c51] : memref<4x2x4x152xf32, #tpu.memory_space<vmem>>, vector<1x2x4x96xf32>
    %114 = vector.shape_cast %113 : vector<1x2x4x96xf32> to vector<2x4x96xf32>
    %c0_175 = arith.constant 0 : index
    %c92 = arith.constant 92 : index
    %c0_176 = arith.constant 0 : index
    %115 = vector.load %arg10[%c0_175, %c92, %c0_176] : memref<2x164x96xf32, #tpu.memory_space<vmem>>, vector<2x4x96xf32>
    tpu.vector_store %arg10[%c0_175, %c92, %c0_176], %114 {strides = array<i32>} : memref<2x164x96xf32, #tpu.memory_space<vmem>>, vector<2x4x96xf32>,
    %c0_177 = arith.constant 0 : index
    %c0_178 = arith.constant 0 : index
    %c0_179 = arith.constant 0 : index
    %c52_180 = arith.constant 52 : index
    %116 = vector.load %arg9[%c0_177, %c0_178, %c0_179, %c52_180] : memref<4x2x4x152xf32, #tpu.memory_space<vmem>>, vector<1x2x4x96xf32>
    %117 = vector.shape_cast %116 : vector<1x2x4x96xf32> to vector<2x4x96xf32>
    %c0_181 = arith.constant 0 : index
    %c96 = arith.constant 96 : index
    %c0_182 = arith.constant 0 : index
    %118 = vector.load %arg10[%c0_181, %c96, %c0_182] : memref<2x164x96xf32, #tpu.memory_space<vmem>>, vector<2x4x96xf32>
    tpu.vector_store %arg10[%c0_181, %c96, %c0_182], %117 {strides = array<i32>} : memref<2x164x96xf32, #tpu.memory_space<vmem>>, vector<2x4x96xf32>,
    %c1_183 = arith.constant 1 : index
    %c0_184 = arith.constant 0 : index
    %c0_185 = arith.constant 0 : index
    %c13_186 = arith.constant 13 : index
    %119 = vector.load %arg9[%c1_183, %c0_184, %c0_185, %c13_186] : memref<4x2x4x152xf32, #tpu.memory_space<vmem>>, vector<1x2x4x96xf32>
    %120 = vector.shape_cast %119 : vector<1x2x4x96xf32> to vector<2x4x96xf32>
    %c0_187 = arith.constant 0 : index
    %c100 = arith.constant 100 : index
    %c0_188 = arith.constant 0 : index
    %121 = vector.load %arg10[%c0_187, %c100, %c0_188] : memref<2x164x96xf32, #tpu.memory_space<vmem>>, vector<2x4x96xf32>
    tpu.vector_store %arg10[%c0_187, %c100, %c0_188], %120 {strides = array<i32>} : memref<2x164x96xf32, #tpu.memory_space<vmem>>, vector<2x4x96xf32>,
    %c1_189 = arith.constant 1 : index
    %c0_190 = arith.constant 0 : index
    %c0_191 = arith.constant 0 : index
    %c14_192 = arith.constant 14 : index
    %122 = vector.load %arg9[%c1_189, %c0_190, %c0_191, %c14_192] : memref<4x2x4x152xf32, #tpu.memory_space<vmem>>, vector<1x2x4x96xf32>
    %123 = vector.shape_cast %122 : vector<1x2x4x96xf32> to vector<2x4x96xf32>
    %c0_193 = arith.constant 0 : index
    %c104 = arith.constant 104 : index
    %c0_194 = arith.constant 0 : index
    %124 = vector.load %arg10[%c0_193, %c104, %c0_194] : memref<2x164x96xf32, #tpu.memory_space<vmem>>, vector<2x4x96xf32>
    tpu.vector_store %arg10[%c0_193, %c104, %c0_194], %123 {strides = array<i32>} : memref<2x164x96xf32, #tpu.memory_space<vmem>>, vector<2x4x96xf32>,
    %c1_195 = arith.constant 1 : index
    %c0_196 = arith.constant 0 : index
    %c0_197 = arith.constant 0 : index
    %c25_198 = arith.constant 25 : index
    %125 = vector.load %arg9[%c1_195, %c0_196, %c0_197, %c25_198] : memref<4x2x4x152xf32, #tpu.memory_space<vmem>>, vector<1x2x4x96xf32>
    %126 = vector.shape_cast %125 : vector<1x2x4x96xf32> to vector<2x4x96xf32>
    %c0_199 = arith.constant 0 : index
    %c108 = arith.constant 108 : index
    %c0_200 = arith.constant 0 : index
    %127 = vector.load %arg10[%c0_199, %c108, %c0_200] : memref<2x164x96xf32, #tpu.memory_space<vmem>>, vector<2x4x96xf32>
    tpu.vector_store %arg10[%c0_199, %c108, %c0_200], %126 {strides = array<i32>} : memref<2x164x96xf32, #tpu.memory_space<vmem>>, vector<2x4x96xf32>,
    %c1_201 = arith.constant 1 : index
    %c0_202 = arith.constant 0 : index
    %c0_203 = arith.constant 0 : index
    %c26_204 = arith.constant 26 : index
    %128 = vector.load %arg9[%c1_201, %c0_202, %c0_203, %c26_204] : memref<4x2x4x152xf32, #tpu.memory_space<vmem>>, vector<1x2x4x96xf32>
    %129 = vector.shape_cast %128 : vector<1x2x4x96xf32> to vector<2x4x96xf32>
    %c0_205 = arith.constant 0 : index
    %c112 = arith.constant 112 : index
    %c0_206 = arith.constant 0 : index
    %130 = vector.load %arg10[%c0_205, %c112, %c0_206] : memref<2x164x96xf32, #tpu.memory_space<vmem>>, vector<2x4x96xf32>
    tpu.vector_store %arg10[%c0_205, %c112, %c0_206], %129 {strides = array<i32>} : memref<2x164x96xf32, #tpu.memory_space<vmem>>, vector<2x4x96xf32>,
    %c1_207 = arith.constant 1 : index
    %c0_208 = arith.constant 0 : index
    %c0_209 = arith.constant 0 : index
    %c37_210 = arith.constant 37 : index
    %131 = vector.load %arg9[%c1_207, %c0_208, %c0_209, %c37_210] : memref<4x2x4x152xf32, #tpu.memory_space<vmem>>, vector<1x2x4x96xf32>
    %132 = vector.shape_cast %131 : vector<1x2x4x96xf32> to vector<2x4x96xf32>
    %c0_211 = arith.constant 0 : index
    %c116 = arith.constant 116 : index
    %c0_212 = arith.constant 0 : index
    %133 = vector.load %arg10[%c0_211, %c116, %c0_212] : memref<2x164x96xf32, #tpu.memory_space<vmem>>, vector<2x4x96xf32>
    tpu.vector_store %arg10[%c0_211, %c116, %c0_212], %132 {strides = array<i32>} : memref<2x164x96xf32, #tpu.memory_space<vmem>>, vector<2x4x96xf32>,
    %c1_213 = arith.constant 1 : index
    %c0_214 = arith.constant 0 : index
    %c0_215 = arith.constant 0 : index
    %c38_216 = arith.constant 38 : index
    %134 = vector.load %arg9[%c1_213, %c0_214, %c0_215, %c38_216] : memref<4x2x4x152xf32, #tpu.memory_space<vmem>>, vector<1x2x4x96xf32>
    %135 = vector.shape_cast %134 : vector<1x2x4x96xf32> to vector<2x4x96xf32>
    %c0_217 = arith.constant 0 : index
    %c120 = arith.constant 120 : index
    %c0_218 = arith.constant 0 : index
    %136 = vector.load %arg10[%c0_217, %c120, %c0_218] : memref<2x164x96xf32, #tpu.memory_space<vmem>>, vector<2x4x96xf32>
    tpu.vector_store %arg10[%c0_217, %c120, %c0_218], %135 {strides = array<i32>} : memref<2x164x96xf32, #tpu.memory_space<vmem>>, vector<2x4x96xf32>,
    %c2_219 = arith.constant 2 : index
    %c0_220 = arith.constant 0 : index
    %c0_221 = arith.constant 0 : index
    %c13_222 = arith.constant 13 : index
    %137 = vector.load %arg9[%c2_219, %c0_220, %c0_221, %c13_222] : memref<4x2x4x152xf32, #tpu.memory_space<vmem>>, vector<1x2x4x96xf32>
    %138 = vector.shape_cast %137 : vector<1x2x4x96xf32> to vector<2x4x96xf32>
    %c0_223 = arith.constant 0 : index
    %c124 = arith.constant 124 : index
    %c0_224 = arith.constant 0 : index
    %139 = vector.load %arg10[%c0_223, %c124, %c0_224] : memref<2x164x96xf32, #tpu.memory_space<vmem>>, vector<2x4x96xf32>
    tpu.vector_store %arg10[%c0_223, %c124, %c0_224], %138 {strides = array<i32>} : memref<2x164x96xf32, #tpu.memory_space<vmem>>, vector<2x4x96xf32>,
    %c2_225 = arith.constant 2 : index
    %c0_226 = arith.constant 0 : index
    %c0_227 = arith.constant 0 : index
    %c14_228 = arith.constant 14 : index
    %140 = vector.load %arg9[%c2_225, %c0_226, %c0_227, %c14_228] : memref<4x2x4x152xf32, #tpu.memory_space<vmem>>, vector<1x2x4x96xf32>
    %141 = vector.shape_cast %140 : vector<1x2x4x96xf32> to vector<2x4x96xf32>
    %c0_229 = arith.constant 0 : index
    %c128 = arith.constant 128 : index
    %c0_230 = arith.constant 0 : index
    %142 = vector.load %arg10[%c0_229, %c128, %c0_230] : memref<2x164x96xf32, #tpu.memory_space<vmem>>, vector<2x4x96xf32>
    tpu.vector_store %arg10[%c0_229, %c128, %c0_230], %141 {strides = array<i32>} : memref<2x164x96xf32, #tpu.memory_space<vmem>>, vector<2x4x96xf32>,
    %c2_231 = arith.constant 2 : index
    %c0_232 = arith.constant 0 : index
    %c0_233 = arith.constant 0 : index
    %c15_234 = arith.constant 15 : index
    %143 = vector.load %arg9[%c2_231, %c0_232, %c0_233, %c15_234] : memref<4x2x4x152xf32, #tpu.memory_space<vmem>>, vector<1x2x4x96xf32>
    %144 = vector.shape_cast %143 : vector<1x2x4x96xf32> to vector<2x4x96xf32>
    %c0_235 = arith.constant 0 : index
    %c132 = arith.constant 132 : index
    %c0_236 = arith.constant 0 : index
    %145 = vector.load %arg10[%c0_235, %c132, %c0_236] : memref<2x164x96xf32, #tpu.memory_space<vmem>>, vector<2x4x96xf32>
    tpu.vector_store %arg10[%c0_235, %c132, %c0_236], %144 {strides = array<i32>} : memref<2x164x96xf32, #tpu.memory_space<vmem>>, vector<2x4x96xf32>,
    %c2_237 = arith.constant 2 : index
    %c0_238 = arith.constant 0 : index
    %c0_239 = arith.constant 0 : index
    %c25_240 = arith.constant 25 : index
    %146 = vector.load %arg9[%c2_237, %c0_238, %c0_239, %c25_240] : memref<4x2x4x152xf32, #tpu.memory_space<vmem>>, vector<1x2x4x96xf32>
    %147 = vector.shape_cast %146 : vector<1x2x4x96xf32> to vector<2x4x96xf32>
    %c0_241 = arith.constant 0 : index
    %c136 = arith.constant 136 : index
    %c0_242 = arith.constant 0 : index
    %148 = vector.load %arg10[%c0_241, %c136, %c0_242] : memref<2x164x96xf32, #tpu.memory_space<vmem>>, vector<2x4x96xf32>
    tpu.vector_store %arg10[%c0_241, %c136, %c0_242], %147 {strides = array<i32>} : memref<2x164x96xf32, #tpu.memory_space<vmem>>, vector<2x4x96xf32>,
    %c2_243 = arith.constant 2 : index
    %c0_244 = arith.constant 0 : index
    %c0_245 = arith.constant 0 : index
    %c26_246 = arith.constant 26 : index
    %149 = vector.load %arg9[%c2_243, %c0_244, %c0_245, %c26_246] : memref<4x2x4x152xf32, #tpu.memory_space<vmem>>, vector<1x2x4x96xf32>
    %150 = vector.shape_cast %149 : vector<1x2x4x96xf32> to vector<2x4x96xf32>
    %c0_247 = arith.constant 0 : index
    %c140 = arith.constant 140 : index
    %c0_248 = arith.constant 0 : index
    %151 = vector.load %arg10[%c0_247, %c140, %c0_248] : memref<2x164x96xf32, #tpu.memory_space<vmem>>, vector<2x4x96xf32>
    tpu.vector_store %arg10[%c0_247, %c140, %c0_248], %150 {strides = array<i32>} : memref<2x164x96xf32, #tpu.memory_space<vmem>>, vector<2x4x96xf32>,
    %c2_249 = arith.constant 2 : index
    %c0_250 = arith.constant 0 : index
    %c0_251 = arith.constant 0 : index
    %c27_252 = arith.constant 27 : index
    %152 = vector.load %arg9[%c2_249, %c0_250, %c0_251, %c27_252] : memref<4x2x4x152xf32, #tpu.memory_space<vmem>>, vector<1x2x4x96xf32>
    %153 = vector.shape_cast %152 : vector<1x2x4x96xf32> to vector<2x4x96xf32>
    %c0_253 = arith.constant 0 : index
    %c144 = arith.constant 144 : index
    %c0_254 = arith.constant 0 : index
    %154 = vector.load %arg10[%c0_253, %c144, %c0_254] : memref<2x164x96xf32, #tpu.memory_space<vmem>>, vector<2x4x96xf32>
    tpu.vector_store %arg10[%c0_253, %c144, %c0_254], %153 {strides = array<i32>} : memref<2x164x96xf32, #tpu.memory_space<vmem>>, vector<2x4x96xf32>,
    %c3_255 = arith.constant 3 : index
    %c0_256 = arith.constant 0 : index
    %c0_257 = arith.constant 0 : index
    %c13_258 = arith.constant 13 : index
    %155 = vector.load %arg9[%c3_255, %c0_256, %c0_257, %c13_258] : memref<4x2x4x152xf32, #tpu.memory_space<vmem>>, vector<1x2x4x96xf32>
    %156 = vector.shape_cast %155 : vector<1x2x4x96xf32> to vector<2x4x96xf32>
    %c0_259 = arith.constant 0 : index
    %c148 = arith.constant 148 : index
    %c0_260 = arith.constant 0 : index
    %157 = vector.load %arg10[%c0_259, %c148, %c0_260] : memref<2x164x96xf32, #tpu.memory_space<vmem>>, vector<2x4x96xf32>
    tpu.vector_store %arg10[%c0_259, %c148, %c0_260], %156 {strides = array<i32>} : memref<2x164x96xf32, #tpu.memory_space<vmem>>, vector<2x4x96xf32>,
    %c3_261 = arith.constant 3 : index
    %c0_262 = arith.constant 0 : index
    %c0_263 = arith.constant 0 : index
    %c14_264 = arith.constant 14 : index
    %158 = vector.load %arg9[%c3_261, %c0_262, %c0_263, %c14_264] : memref<4x2x4x152xf32, #tpu.memory_space<vmem>>, vector<1x2x4x96xf32>
    %159 = vector.shape_cast %158 : vector<1x2x4x96xf32> to vector<2x4x96xf32>
    %c0_265 = arith.constant 0 : index
    %c152 = arith.constant 152 : index
    %c0_266 = arith.constant 0 : index
    %160 = vector.load %arg10[%c0_265, %c152, %c0_266] : memref<2x164x96xf32, #tpu.memory_space<vmem>>, vector<2x4x96xf32>
    tpu.vector_store %arg10[%c0_265, %c152, %c0_266], %159 {strides = array<i32>} : memref<2x164x96xf32, #tpu.memory_space<vmem>>, vector<2x4x96xf32>,
    %c3_267 = arith.constant 3 : index
    %c0_268 = arith.constant 0 : index
    %c0_269 = arith.constant 0 : index
    %c25_270 = arith.constant 25 : index
    %161 = vector.load %arg9[%c3_267, %c0_268, %c0_269, %c25_270] : memref<4x2x4x152xf32, #tpu.memory_space<vmem>>, vector<1x2x4x96xf32>
    %162 = vector.shape_cast %161 : vector<1x2x4x96xf32> to vector<2x4x96xf32>
    %c0_271 = arith.constant 0 : index
    %c156 = arith.constant 156 : index
    %c0_272 = arith.constant 0 : index
    %163 = vector.load %arg10[%c0_271, %c156, %c0_272] : memref<2x164x96xf32, #tpu.memory_space<vmem>>, vector<2x4x96xf32>
    tpu.vector_store %arg10[%c0_271, %c156, %c0_272], %162 {strides = array<i32>} : memref<2x164x96xf32, #tpu.memory_space<vmem>>, vector<2x4x96xf32>,
    %c3_273 = arith.constant 3 : index
    %c0_274 = arith.constant 0 : index
    %c0_275 = arith.constant 0 : index
    %c26_276 = arith.constant 26 : index
    %164 = vector.load %arg9[%c3_273, %c0_274, %c0_275, %c26_276] : memref<4x2x4x152xf32, #tpu.memory_space<vmem>>, vector<1x2x4x96xf32>
    %165 = vector.shape_cast %164 : vector<1x2x4x96xf32> to vector<2x4x96xf32>
    %c0_277 = arith.constant 0 : index
    %c160 = arith.constant 160 : index
    %c0_278 = arith.constant 0 : index
    %166 = vector.load %arg10[%c0_277, %c160, %c0_278] : memref<2x164x96xf32, #tpu.memory_space<vmem>>, vector<2x4x96xf32>
    tpu.vector_store %arg10[%c0_277, %c160, %c0_278], %165 {strides = array<i32>} : memref<2x164x96xf32, #tpu.memory_space<vmem>>, vector<2x4x96xf32>,
    %c0_279 = arith.constant 0 : index
    %c0_280 = arith.constant 0 : index
    %167 = vector.load %arg6[%c0_279, %c0_280] : memref<4x164xf32, #tpu.memory_space<vmem>>, vector<4x164xf32>
    %168 = vector.shape_cast %167 : vector<4x164xf32> to vector<1x4x164xf32>
    %169 = vector.shape_cast %168 : vector<1x4x164xf32> to vector<1x4x164xf32>
    %170 = vector.broadcast %169 : vector<1x4x164xf32> to vector<2x4x164xf32>
    %c0_281 = arith.constant 0 : index
    %c0_282 = arith.constant 0 : index
    %c0_283 = arith.constant 0 : index
    %171 = vector.load %arg10[%c0_281, %c0_282, %c0_283] : memref<2x164x96xf32, #tpu.memory_space<vmem>>, vector<2x164x96xf32>
    %cst_284 = arith.constant dense<0.000000e+00> : vector<2x4x96xf32>
    %172 = tpu.matmul %170, %171, %cst_284 {dimension_numbers = #tpu.dot_dimension_numbers<[2], [1], [1], [2], [0, 0, 0, 1, 1, 2], [0], [0]>} : vector<2x4x164xf32>, vector<2x164x96xf32>, vector<2x4x96xf32> -> vector<2x4x96xf32>
    %173 = arith.addf %19, %172 : vector<2x4x96xf32>
    %174 = vector.extract_strided_slice %173 {offsets = [0, 0, 0], sizes = [2, 4, 8], strides = [1, 1, 1]} : vector<2x4x96xf32> to vector<2x4x8xf32>
    %c0_285 = arith.constant 0 : index
    %c0_286 = arith.constant 0 : index
    %c0_287 = arith.constant 0 : index
    %175 = vector.load %arg8[%c0_285, %c0_286, %c0_287] : memref<2x4x64xf32, #tpu.memory_space<vmem>>, vector<2x4x8xf32>
    tpu.vector_store %arg8[%c0_285, %c0_286, %c0_287], %174 {strides = array<i32>} : memref<2x4x64xf32, #tpu.memory_space<vmem>>, vector<2x4x8xf32>,
    %176 = vector.extract_strided_slice %173 {offsets = [0, 0, 12], sizes = [2, 4, 8], strides = [1, 1, 1]} : vector<2x4x96xf32> to vector<2x4x8xf32>
    %c0_288 = arith.constant 0 : index
    %c0_289 = arith.constant 0 : index
    %c8_290 = arith.constant 8 : index
    %177 = vector.load %arg8[%c0_288, %c0_289, %c8_290] : memref<2x4x64xf32, #tpu.memory_space<vmem>>, vector<2x4x8xf32>
    tpu.vector_store %arg8[%c0_288, %c0_289, %c8_290], %176 {strides = array<i32>} : memref<2x4x64xf32, #tpu.memory_space<vmem>>, vector<2x4x8xf32>,
    %178 = vector.extract_strided_slice %173 {offsets = [0, 0, 24], sizes = [2, 4, 8], strides = [1, 1, 1]} : vector<2x4x96xf32> to vector<2x4x8xf32>
    %c0_291 = arith.constant 0 : index
    %c0_292 = arith.constant 0 : index
    %c16_293 = arith.constant 16 : index
    %179 = vector.load %arg8[%c0_291, %c0_292, %c16_293] : memref<2x4x64xf32, #tpu.memory_space<vmem>>, vector<2x4x8xf32>
    tpu.vector_store %arg8[%c0_291, %c0_292, %c16_293], %178 {strides = array<i32>} : memref<2x4x64xf32, #tpu.memory_space<vmem>>, vector<2x4x8xf32>,
    %180 = vector.extract_strided_slice %173 {offsets = [0, 0, 36], sizes = [2, 4, 8], strides = [1, 1, 1]} : vector<2x4x96xf32> to vector<2x4x8xf32>
    %c0_294 = arith.constant 0 : index
    %c0_295 = arith.constant 0 : index
    %c24_296 = arith.constant 24 : index
    %181 = vector.load %arg8[%c0_294, %c0_295, %c24_296] : memref<2x4x64xf32, #tpu.memory_space<vmem>>, vector<2x4x8xf32>
    tpu.vector_store %arg8[%c0_294, %c0_295, %c24_296], %180 {strides = array<i32>} : memref<2x4x64xf32, #tpu.memory_space<vmem>>, vector<2x4x8xf32>,
    %182 = vector.extract_strided_slice %173 {offsets = [0, 0, 48], sizes = [2, 4, 8], strides = [1, 1, 1]} : vector<2x4x96xf32> to vector<2x4x8xf32>
    %c0_297 = arith.constant 0 : index
    %c0_298 = arith.constant 0 : index
    %c32_299 = arith.constant 32 : index
    %183 = vector.load %arg8[%c0_297, %c0_298, %c32_299] : memref<2x4x64xf32, #tpu.memory_space<vmem>>, vector<2x4x8xf32>
    tpu.vector_store %arg8[%c0_297, %c0_298, %c32_299], %182 {strides = array<i32>} : memref<2x4x64xf32, #tpu.memory_space<vmem>>, vector<2x4x8xf32>,
    %184 = vector.extract_strided_slice %173 {offsets = [0, 0, 60], sizes = [2, 4, 8], strides = [1, 1, 1]} : vector<2x4x96xf32> to vector<2x4x8xf32>
    %c0_300 = arith.constant 0 : index
    %c0_301 = arith.constant 0 : index
    %c40_302 = arith.constant 40 : index
    %185 = vector.load %arg8[%c0_300, %c0_301, %c40_302] : memref<2x4x64xf32, #tpu.memory_space<vmem>>, vector<2x4x8xf32>
    tpu.vector_store %arg8[%c0_300, %c0_301, %c40_302], %184 {strides = array<i32>} : memref<2x4x64xf32, #tpu.memory_space<vmem>>, vector<2x4x8xf32>,
    %186 = vector.extract_strided_slice %173 {offsets = [0, 0, 72], sizes = [2, 4, 8], strides = [1, 1, 1]} : vector<2x4x96xf32> to vector<2x4x8xf32>
    %c0_303 = arith.constant 0 : index
    %c0_304 = arith.constant 0 : index
    %c48_305 = arith.constant 48 : index
    %187 = vector.load %arg8[%c0_303, %c0_304, %c48_305] : memref<2x4x64xf32, #tpu.memory_space<vmem>>, vector<2x4x8xf32>
    tpu.vector_store %arg8[%c0_303, %c0_304, %c48_305], %186 {strides = array<i32>} : memref<2x4x64xf32, #tpu.memory_space<vmem>>, vector<2x4x8xf32>,
    %188 = vector.extract_strided_slice %173 {offsets = [0, 0, 84], sizes = [2, 4, 8], strides = [1, 1, 1]} : vector<2x4x96xf32> to vector<2x4x8xf32>
    %c0_306 = arith.constant 0 : index
    %c0_307 = arith.constant 0 : index
    %c56_308 = arith.constant 56 : index
    %189 = vector.load %arg8[%c0_306, %c0_307, %c56_308] : memref<2x4x64xf32, #tpu.memory_space<vmem>>, vector<2x4x8xf32>
    tpu.vector_store %arg8[%c0_306, %c0_307, %c56_308], %188 {strides = array<i32>} : memref<2x4x64xf32, #tpu.memory_space<vmem>>, vector<2x4x8xf32>,
    return
  }
  func.func @transform_0(%arg0: i32) -> i32 {
    %c0_i32 = arith.constant 0 : i32
    %c0_i32_0 = arith.constant 0 : i32
    return %c0_i32 : i32
  }
  func.func @transform_1(%arg0: i32) -> (i32, i32, i32) {
    %c0_i32 = arith.constant 0 : i32
    %c0_i32_0 = arith.constant 0 : i32
    %c0_i32_1 = arith.constant 0 : i32
    return %arg0, %c0_i32, %c0_i32_0 : i32, i32, i32
  }
  func.func @transform_2(%arg0: i32) -> (i32, i32, i32) {
    %c0_i32 = arith.constant 0 : i32
    %c0_i32_0 = arith.constant 0 : i32
    %c0_i32_1 = arith.constant 0 : i32
    return %arg0, %c0_i32, %c0_i32_0 : i32, i32, i32
  }
  func.func @transform_3(%arg0: i32) -> (i32, i32, i32) {
    %c0_i32 = arith.constant 0 : i32
    %c0_i32_0 = arith.constant 0 : i32
    %c0_i32_1 = arith.constant 0 : i32
    return %arg0, %c0_i32, %c0_i32_0 : i32, i32, i32
  }
  func.func @transform_4(%arg0: i32) -> (i32, i32, i32) {
    %c0_i32 = arith.constant 0 : i32
    %c0_i32_0 = arith.constant 0 : i32
    %c0_i32_1 = arith.constant 0 : i32
    return %arg0, %c0_i32, %c0_i32_0 : i32, i32, i32
  }
  func.func @transform_5(%arg0: i32) -> (i32, i32) {
    %c0_i32 = arith.constant 0 : i32
    %c0_i32_0 = arith.constant 0 : i32
    %c0_i32_1 = arith.constant 0 : i32
    return %c0_i32, %c0_i32_0 : i32, i32
  }
  func.func @transform_6(%arg0: i32) -> (i32, i32, i32) {
    %c0_i32 = arith.constant 0 : i32
    %c0_i32_0 = arith.constant 0 : i32
    %c0_i32_1 = arith.constant 0 : i32
    %c0_i32_2 = arith.constant 0 : i32
    return %c0_i32, %c0_i32_0, %c0_i32_1 : i32, i32, i32
  }
  func.func @transform_7(%arg0: i32) -> (i32, i32, i32) {
    %c0_i32 = arith.constant 0 : i32
    %c0_i32_0 = arith.constant 0 : i32
    %c0_i32_1 = arith.constant 0 : i32
    return %arg0, %c0_i32, %c0_i32_0 : i32, i32, i32
  }
}

</mosaic_0001>

<llo_original>
// kernel: tpu_custom_call.1
$region0: #{tpu_custom_call.1}
  #allocation0 [shape = 'u32[]', space=smem, size = 0x4, offset = 0x4, fixed_abs, tag = 'smem constant byte address 0x4 - core index']
  #allocation1 [shape = 'u32[144,128]{1,0:T(1,128)}', space=vmem, size = 0x12000, scoped, tag = 'internal scratch']
  #allocation2 [shape = 'f32[4,2,4,152]{3,2,1,0:T(4,128)}', space=vmem, size = 0x8000, scoped, tag = 'scratch operand']
  #allocation3 [shape = 'f32[2,164,96]{2,1,0:T(8,128)}', space=vmem, size = 0x2a000, scoped, tag = 'scratch operand']
  %s0 = inlined_call_operand.vmem [shape: f32[2], index: 0, kind: input, shape index: {}]
  %s1 = inlined_call_operand.hbm [shape: f32[2,4,152], index: 1, kind: input, shape index: {}]
  %s2 = inlined_call_operand.hbm [shape: f32[2,4,152], index: 2, kind: input, shape index: {}]
  %s3 = inlined_call_operand.hbm [shape: f32[2,4,152], index: 3, kind: input, shape index: {}]
  %s4 = inlined_call_operand.hbm [shape: f32[2,4,152], index: 4, kind: input, shape index: {}]
  %s5 = inlined_call_operand.vmem [shape: f32[4,164], index: 5, kind: input, shape index: {}]
  %s6 = inlined_call_operand.vmem [shape: f32[1,4,1], index: 6, kind: input, shape index: {}]
  %s7 = inlined_call_operand.hbm [shape: f32[2,4,64], index: 7, kind: output, shape index: {}]
  %s8 = sld [smem:[#allocation0]]
  $region58: #{tpu_custom_call.1} parent=0
    _
  %s10 = ssub.s32 1, %s8
  %s11 = scalar_select 0, %s10, %s8
  $region1: #{tpu_custom_call.1} parent=0
    #allocation4 [shape = 'u8[512]{0}', space=smem, size = 0x200, scoped, tag = 'input window, operand 0, single buffered']
    #allocation5 [shape = 's32[1]{0}', space=sflag, size = 0x4, scoped, tag = 'scoped memory for tpu_custom_call.1']
    #allocation6 [shape = 's32[1]{0}', space=sflag, size = 0x4, scoped, tag = 'scoped memory for tpu_custom_call.1']
    #allocation7 [shape = 's32[1]{0}', space=sflag, size = 0x4, scoped, tag = 'scoped memory for tpu_custom_call.1']
    #allocation8 [shape = 'u8[8192]{0}', space=vmem, size = 0x2000, scoped, tag = 'input window, operand 1, single buffered']
    #allocation9 [shape = 'u8[8192]{0}', space=vmem, size = 0x2000, scoped, tag = 'input window, operand 2, single buffered']
    #allocation10 [shape = 's32[1]{0}', space=sflag, size = 0x4, scoped, tag = 'scoped memory for tpu_custom_call.1']
    #allocation11 [shape = 'u8[8192]{0}', space=vmem, size = 0x2000, scoped, tag = 'input window, operand 3, single buffered']
    #allocation12 [shape = 'u8[8192]{0}', space=vmem, size = 0x2000, scoped, tag = 'input window, operand 4, single buffered']
    #allocation13 [shape = 's32[1]{0}', space=sflag, size = 0x4, scoped, tag = 'scoped memory for tpu_custom_call.1']
    #allocation14 [shape = 'u8[4096]{0}', space=vmem, size = 0x1000, scoped, tag = 'output window, operand 0, single buffered']
    %12 = vsyncpa [#allocation7], 0
    %13 = vsyncpa [#allocation5], 0
    %14 = vsyncpa [#allocation10], 0
    %15 = vsyncpa [#allocation13], 0
    %16 = vsyncpa [#allocation6], 0
    // Predicated region
    $region2: #{tpu_custom_call.1} parent=1 // pred_check
      _
    $region3: #{tpu_custom_call.1} parent=1 // pred_check_branch
      %18 = sbr.rel (0) target = $region5
    $region4: #{tpu_custom_call.1} parent=1 // pred_region
      %s20 = ssub.s32 16, 16
      %21 = vsyncadd [#allocation7], %s20
      %s23 = sshll.u32 %s0, 4
      %s24 = int_to_ptr.vmem [resolvable:$true] %s23
      %26 = dma.vmem_to_smem %s24, 16, [#allocation4], [#allocation7]
    $region5: #{tpu_custom_call.1} parent=1 // pred_fallthru
      _
    // Predicated region
    $region6: #{tpu_custom_call.1} parent=1 // pred_check
      _
    $region7: #{tpu_custom_call.1} parent=1 // pred_check_branch
      %28 = sbr.rel (0) target = $region9
    $region8: #{tpu_custom_call.1} parent=1 // pred_region
      %s30 = ssub.s32 256, 256
      %31 = vsyncadd [#allocation5], %s30
      %s32 = sshll.u32 [#allocation8], 4
      %s33 = int_to_ptr.vmem [resolvable:$true] %s32
      %38 = dma.hbm_to_vmem [thread:$0]  %s1, 256, %s33, [#allocation5], 128, 128, 8
    $region9: #{tpu_custom_call.1} parent=1 // pred_fallthru
      _
    // Predicated region
    $region10: #{tpu_custom_call.1} parent=1 // pred_check
      _
    $region11: #{tpu_custom_call.1} parent=1 // pred_check_branch
      %40 = sbr.rel (0) target = $region13
    $region12: #{tpu_custom_call.1} parent=1 // pred_region
      %s42 = ssub.s32 256, 256
      %43 = vsyncadd [#allocation10], %s42
      %s44 = sshll.u32 [#allocation9], 4
      %s45 = int_to_ptr.vmem [resolvable:$true] %s44
      %50 = dma.hbm_to_vmem [thread:$0]  %s2, 256, %s45, [#allocation10], 128, 128, 8
    $region13: #{tpu_custom_call.1} parent=1 // pred_fallthru
      _
    // Predicated region
    $region14: #{tpu_custom_call.1} parent=1 // pred_check
      _
    $region15: #{tpu_custom_call.1} parent=1 // pred_check_branch
      %52 = sbr.rel (0) target = $region17
    $region16: #{tpu_custom_call.1} parent=1 // pred_region
      %s54 = ssub.s32 256, 256
      %55 = vsyncadd [#allocation10], %s54
      %s56 = sshll.u32 [#allocation11], 4
      %s57 = int_to_ptr.vmem [resolvable:$true] %s56
      %62 = dma.hbm_to_vmem [thread:$0]  %s3, 256, %s57, [#allocation10], 128, 128, 8
    $region17: #{tpu_custom_call.1} parent=1 // pred_fallthru
      _
    // Predicated region
    $region18: #{tpu_custom_call.1} parent=1 // pred_check
      _
    $region19: #{tpu_custom_call.1} parent=1 // pred_check_branch
      %64 = sbr.rel (0) target = $region21
    $region20: #{tpu_custom_call.1} parent=1 // pred_region
      %s66 = ssub.s32 256, 256
      %67 = vsyncadd [#allocation13], %s66
      %s68 = sshll.u32 [#allocation12], 4
      %s69 = int_to_ptr.vmem [resolvable:$true] %s68
      %74 = dma.hbm_to_vmem [thread:$0]  %s4, 256, %s69, [#allocation13], 128, 128, 8
    $region21: #{tpu_custom_call.1} parent=1 // pred_fallthru
      _
    // Predicated region
    $region22: #{tpu_custom_call.1} parent=1 // pred_check
      _
    $region23: #{tpu_custom_call.1} parent=1 // pred_check_branch
      %76 = sbr.rel (0) target = $region25
    $region24: #{tpu_custom_call.1} parent=1 // pred_region
      _
    $region25: #{tpu_custom_call.1} parent=1 // pred_fallthru
      _
    // Predicated region
    $region26: #{tpu_custom_call.1} parent=1 // pred_check
      _
    $region27: #{tpu_custom_call.1} parent=1 // pred_check_branch
      %78 = sbr.rel (0) target = $region29
    $region28: #{tpu_custom_call.1} parent=1 // pred_region
      _
    $region29: #{tpu_custom_call.1} parent=1 // pred_fallthru
      _
    // Predicated region
    $region30: #{tpu_custom_call.1} parent=1 // pred_check
      _
    $region31: #{tpu_custom_call.1} parent=1 // pred_check_branch
      %80 = sbr.rel (0) target = $region33
    $region32: #{tpu_custom_call.1} parent=1 // pred_region
      %81 = dma.done [#allocation7], 16
    $region33: #{tpu_custom_call.1} parent=1 // pred_fallthru
      _
    // Predicated region
    $region34: #{tpu_custom_call.1} parent=1 // pred_check
      _
    $region35: #{tpu_custom_call.1} parent=1 // pred_check_branch
      %83 = sbr.rel (0) target = $region37
    $region36: #{tpu_custom_call.1} parent=1 // pred_region
      %84 = dma.done [#allocation5], 256
    $region37: #{tpu_custom_call.1} parent=1 // pred_fallthru
      _
    // Predicated region
    $region38: #{tpu_custom_call.1} parent=1 // pred_check
      _
    $region39: #{tpu_custom_call.1} parent=1 // pred_check_branch
      %86 = sbr.rel (0) target = $region41
    $region40: #{tpu_custom_call.1} parent=1 // pred_region
      %87 = dma.done [#allocation10], 256
    $region41: #{tpu_custom_call.1} parent=1 // pred_fallthru
      _
    // Predicated region
    $region42: #{tpu_custom_call.1} parent=1 // pred_check
      _
    $region43: #{tpu_custom_call.1} parent=1 // pred_check_branch
      %89 = sbr.rel (0) target = $region45
    $region44: #{tpu_custom_call.1} parent=1 // pred_region
      %90 = dma.done [#allocation10], 256
    $region45: #{tpu_custom_call.1} parent=1 // pred_fallthru
      _
    // Predicated region
    $region46: #{tpu_custom_call.1} parent=1 // pred_check
      _
    $region47: #{tpu_custom_call.1} parent=1 // pred_check_branch
      %92 = sbr.rel (0) target = $region49
    $region48: #{tpu_custom_call.1} parent=1 // pred_region
      %93 = dma.done [#allocation13], 256
    $region49: #{tpu_custom_call.1} parent=1 // pred_fallthru
      _
    %94 = sfence
    %v95 = vld [vmem:[#allocation8] sm:$0xf]
    %v96 = vld [vmem:[#allocation8 + $0x8] sm:$0xf]
    %v97 = vld [vmem:[#allocation9] sm:$0xf]
    %v98 = vld [vmem:[#allocation9 + $0x8] sm:$0xf]
    %v99 = vld [vmem:[#allocation11] sm:$0xf]
    %v100 = vld [vmem:[#allocation11 + $0x8] sm:$0xf]
    %v101 = vld [vmem:[#allocation12] sm:$0xf]
    %v102 = vld [vmem:[#allocation12 + $0x8] sm:$0xf]
    %v103 = vadd.f32 %v95, %v97
    %v104 = vadd.f32 %v96, %v98
    %v105 = vadd.f32 %v103, %v99
    %v106 = vadd.f32 %v104, %v100
    %v107 = vadd.f32 %v105, %v101
    %v108 = vadd.f32 %v106, %v102
    %s109 = sld [smem:[#allocation4]]
    %v110 = vstv %s109
    %v111 = vmul.f32 %v107, %v110
    %v112 = vmul.f32 %v108, %v110
    %v113 = vmax.f32 %v95, %v97
    %v114 = vmax.f32 %v96, %v98
    %v115 = vmax.f32 %v99, %v101
    %v116 = vmax.f32 %v100, %v102
    %v117 = vmax.f32 %v113, %v115
    %v118 = vmax.f32 %v114, %v116
    %s119 = sld [smem:[#allocation4 + $0x1]]
    %v120 = vstv %s119
    %v121 = vmul.f32 %v117, %v120
    %v122 = vmul.f32 %v118, %v120
    %v123 = vadd.f32 %v111, %v121
    %v124 = vadd.f32 %v112, %v122
    %v125 = vld [vmem:[%s6] sm:$0xf]
    %127 = vset.pattern.permute.xlu0 0
    %128 = vperm.xlu0 %127, %v125
    %v129 = vpop.permute.xlu0 %128
    %v131 = vadd.f32 %v123, %v129
    %v132 = vadd.f32 %v124, %v129
    %v133 = vld [vmem:[#allocation8] sm:$0xff]
    %v134 = vld [vmem:[#allocation8 + $0x8] sm:$0xff]
    %v135 = vmax.f32 %v133, 0.0
    %v136 = vmax.f32 %v134, 0.0
    %vm137 = vcmask 1043456
    %vm138 = vcmask 195588
    %vm139 = vmor %vm138, %vm137
    %140 = vst.msk [vmem:[#allocation2] sm:$0xff] %vm139, %v135
    %141 = vst.msk [vmem:[#allocation2 + $0x8] sm:$0xff] %vm139, %v136
    %v142 = vld [vmem:[#allocation9] sm:$0xff]
    %v143 = vld [vmem:[#allocation9 + $0x8] sm:$0xff]
    %v144 = vmax.f32 %v142, 0.0
    %v145 = vmax.f32 %v143, 0.0
    %s146 = scalar_lea.vmem [#allocation2], 16
    %147 = vst.msk [vmem:[%s146] sm:$0xff] %vm139, %v144
    %148 = vst.msk [vmem:[%s146 + $0x8] sm:$0xff] %vm139, %v145
    %v149 = vld [vmem:[#allocation11] sm:$0xff]
    %v150 = vld [vmem:[#allocation11 + $0x8] sm:$0xff]
    %v151 = vmax.f32 %v149, 0.0
    %v152 = vmax.f32 %v150, 0.0
    %s153 = scalar_lea.vmem [#allocation2], 32
    %154 = vst.msk [vmem:[%s153] sm:$0xff] %vm139, %v151
    %155 = vst.msk [vmem:[%s153 + $0x8] sm:$0xff] %vm139, %v152
    %v156 = vld [vmem:[#allocation12] sm:$0xff]
    %v157 = vld [vmem:[#allocation12 + $0x8] sm:$0xff]
    %v158 = vmax.f32 %v156, 0.0
    %v159 = vmax.f32 %v157, 0.0
    %s160 = scalar_lea.vmem [#allocation2], 48
    %161 = vst.msk [vmem:[%s160] sm:$0xff] %vm139, %v158
    %162 = vst.msk [vmem:[%s160 + $0x8] sm:$0xff] %vm139, %v159
    %v163 = vld [vmem:[#allocation2] sm:$0xf]
    %v164 = vld [vmem:[#allocation2 + $0x8] sm:$0xf]
    %vm165 = vcmask 781312
    %166 = vst.msk [vmem:[#allocation3] sm:$0xf] %vm165, %v163
    %167 = vst.msk [vmem:[#allocation3 + $0xa8] sm:$0xf] %vm165, %v164
    %v168 = vld [vmem:[#allocation2] sm:$0xf]
    %v169 = vld [vmem:[#allocation2 + $0x8] sm:$0xf]
    %172 = vrot.lane.b32.xlu0 %v168, 127
    %v173 = vpop.permute.xlu0 %172
    %174 = vrot.lane.b32.xlu0 %v169, 127
    %v175 = vpop.permute.xlu0 %174
    %178 = vst.msk [vmem:[#allocation3 + $0x4] sm:$0xf] %vm165, %v173
    %179 = vst.msk [vmem:[#allocation3 + $0xac] sm:$0xf] %vm165, %v175
    %v180 = vld [vmem:[#allocation2] sm:$0xf]
    %v181 = vld [vmem:[#allocation2 + $0x8] sm:$0xf]
    %184 = vrot.lane.b32.xlu0 %v180, 126
    %v185 = vpop.permute.xlu0 %184
    %186 = vrot.lane.b32.xlu0 %v181, 126
    %v187 = vpop.permute.xlu0 %186
    %190 = vst.msk [vmem:[#allocation3 + $0x8] sm:$0xf] %vm165, %v185
    %191 = vst.msk [vmem:[#allocation3 + $0xb0] sm:$0xf] %vm165, %v187
    %v192 = vld [vmem:[#allocation2] sm:$0xf]
    %v193 = vld [vmem:[#allocation2 + $0x8] sm:$0xf]
    %196 = vrot.lane.b32.xlu0 %v192, 125
    %v197 = vpop.permute.xlu0 %196
    %198 = vrot.lane.b32.xlu0 %v193, 125
    %v199 = vpop.permute.xlu0 %198
    %202 = vst.msk [vmem:[#allocation3 + $0xc] sm:$0xf] %vm165, %v197
    %203 = vst.msk [vmem:[#allocation3 + $0xb4] sm:$0xf] %vm165, %v199
    %v204 = vld [vmem:[#allocation2] sm:$0xf]
    %v205 = vld [vmem:[#allocation2 + $0x8] sm:$0xf]
    %208 = vrot.lane.b32.xlu0 %v204, 124
    %v209 = vpop.permute.xlu0 %208
    %210 = vrot.lane.b32.xlu0 %v205, 124
    %v211 = vpop.permute.xlu0 %210
    %214 = vst.msk [vmem:[#allocation3 + $0x10] sm:$0xf] %vm165, %v209
    %215 = vst.msk [vmem:[#allocation3 + $0xb8] sm:$0xf] %vm165, %v211
    %v216 = vld [vmem:[#allocation2] sm:$0xf]
    %v217 = vld [vmem:[#allocation2 + $0x8] sm:$0xf]
    %220 = vrot.lane.b32.xlu0 %v216, 116
    %v221 = vpop.permute.xlu0 %220
    %222 = vrot.lane.b32.xlu0 %v217, 116
    %v223 = vpop.permute.xlu0 %222
    %226 = vst.msk [vmem:[#allocation3 + $0x14] sm:$0xf] %vm165, %v221
    %227 = vst.msk [vmem:[#allocation3 + $0xbc] sm:$0xf] %vm165, %v223
    %v228 = vld [vmem:[#allocation2] sm:$0xf]
    %v229 = vld [vmem:[#allocation2 + $0x8] sm:$0xf]
    %232 = vrot.lane.b32.xlu0 %v228, 115
    %v233 = vpop.permute.xlu0 %232
    %234 = vrot.lane.b32.xlu0 %v229, 115
    %v235 = vpop.permute.xlu0 %234
    %238 = vst.msk [vmem:[#allocation3 + $0x18] sm:$0xf] %vm165, %v233
    %239 = vst.msk [vmem:[#allocation3 + $0xc0] sm:$0xf] %vm165, %v235
    %v240 = vld [vmem:[#allocation2] sm:$0xf]
    %v241 = vld [vmem:[#allocation2 + $0x8] sm:$0xf]
    %244 = vrot.lane.b32.xlu0 %v240, 114
    %v245 = vpop.permute.xlu0 %244
    %246 = vrot.lane.b32.xlu0 %v241, 114
    %v247 = vpop.permute.xlu0 %246
    %250 = vst.msk [vmem:[#allocation3 + $0x1c] sm:$0xf] %vm165, %v245
    %251 = vst.msk [vmem:[#allocation3 + $0xc4] sm:$0xf] %vm165, %v247
    %v252 = vld [vmem:[#allocation2] sm:$0xf]
    %v253 = vld [vmem:[#allocation2 + $0x8] sm:$0xf]
    %256 = vrot.lane.b32.xlu0 %v252, 113
    %v257 = vpop.permute.xlu0 %256
    %258 = vrot.lane.b32.xlu0 %v253, 113
    %v259 = vpop.permute.xlu0 %258
    %262 = vst.msk [vmem:[#allocation3 + $0x20] sm:$0xf] %vm165, %v257
    %263 = vst.msk [vmem:[#allocation3 + $0xc8] sm:$0xf] %vm165, %v259
    %v264 = vld [vmem:[#allocation2] sm:$0xf]
    %v265 = vld [vmem:[#allocation2 + $0x8] sm:$0xf]
    %268 = vrot.lane.b32.xlu0 %v264, 112
    %v269 = vpop.permute.xlu0 %268
    %270 = vrot.lane.b32.xlu0 %v265, 112
    %v271 = vpop.permute.xlu0 %270
    %274 = vst.msk [vmem:[#allocation3 + $0x24] sm:$0xf] %vm165, %v269
    %275 = vst.msk [vmem:[#allocation3 + $0xcc] sm:$0xf] %vm165, %v271
    %v276 = vld [vmem:[#allocation2] sm:$0xf]
    %v277 = vld [vmem:[#allocation2 + $0x8] sm:$0xf]
    %280 = vrot.lane.b32.xlu0 %v276, 104
    %v281 = vpop.permute.xlu0 %280
    %282 = vrot.lane.b32.xlu0 %v277, 104
    %v283 = vpop.permute.xlu0 %282
    %286 = vst.msk [vmem:[#allocation3 + $0x28] sm:$0xf] %vm165, %v281
    %287 = vst.msk [vmem:[#allocation3 + $0xd0] sm:$0xf] %vm165, %v283
    %v288 = vld [vmem:[#allocation2] sm:$0xf]
    %v289 = vld [vmem:[#allocation2 + $0x8] sm:$0xf]
    %292 = vrot.lane.b32.xlu0 %v288, 103
    %v293 = vpop.permute.xlu0 %292
    %294 = vrot.lane.b32.xlu0 %v289, 103
    %v295 = vpop.permute.xlu0 %294
    %298 = vst.msk [vmem:[#allocation3 + $0x2c] sm:$0xf] %vm165, %v293
    %299 = vst.msk [vmem:[#allocation3 + $0xd4] sm:$0xf] %vm165, %v295
    %v300 = vld [vmem:[#allocation2] sm:$0xf]
    %v301 = vld [vmem:[#allocation2 + $0x8] sm:$0xf]
    %304 = vrot.lane.b32.xlu0 %v300, 102
    %v305 = vpop.permute.xlu0 %304
    %306 = vrot.lane.b32.xlu0 %v301, 102
    %v307 = vpop.permute.xlu0 %306
    %310 = vst.msk [vmem:[#allocation3 + $0x30] sm:$0xf] %vm165, %v305
    %311 = vst.msk [vmem:[#allocation3 + $0xd8] sm:$0xf] %vm165, %v307
    %v312 = vld [vmem:[#allocation2] sm:$0xf]
    %v313 = vld [vmem:[#allocation2 + $0x8] sm:$0xf]
    %316 = vrot.lane.b32.xlu0 %v312, 101
    %v317 = vpop.permute.xlu0 %316
    %318 = vrot.lane.b32.xlu0 %v313, 101
    %v319 = vpop.permute.xlu0 %318
    %322 = vst.msk [vmem:[#allocation3 + $0x34] sm:$0xf] %vm165, %v317
    %323 = vst.msk [vmem:[#allocation3 + $0xdc] sm:$0xf] %vm165, %v319
    %v324 = vld [vmem:[#allocation2] sm:$0xf]
    %v325 = vld [vmem:[#allocation2 + $0x8] sm:$0xf]
    %328 = vrot.lane.b32.xlu0 %v324, 100
    %v329 = vpop.permute.xlu0 %328
    %330 = vrot.lane.b32.xlu0 %v325, 100
    %v331 = vpop.permute.xlu0 %330
    %334 = vst.msk [vmem:[#allocation3 + $0x38] sm:$0xf] %vm165, %v329
    %335 = vst.msk [vmem:[#allocation3 + $0xe0] sm:$0xf] %vm165, %v331
    %v336 = vld [vmem:[#allocation2] sm:$0xff]
    %v337 = vld [vmem:[#allocation2 + $0x8] sm:$0xff]
    %v340 = vcombine.high %v336, %v336
    %v341 = vcombine.high %v337, %v337
    %342 = vrot.lane.b32.xlu0 %v336, 92
    %v343 = vpop.permute.xlu0 %342
    %344 = vrot.lane.b32.xlu0 %v340, 92
    %v345 = vpop.permute.xlu0 %344
    %346 = vrot.lane.b32.xlu0 %v337, 92
    %v347 = vpop.permute.xlu0 %346
    %348 = vrot.lane.b32.xlu0 %v341, 92
    %v349 = vpop.permute.xlu0 %348
    %vm350 = vcmask 752640
    %v351 = vsel %vm350, %v343, %v345
    %v352 = vsel %vm350, %v347, %v349
    %355 = vst.msk [vmem:[#allocation3 + $0x3c] sm:$0xf] %vm165, %v351
    %356 = vst.msk [vmem:[#allocation3 + $0xe4] sm:$0xf] %vm165, %v352
    %v357 = vld [vmem:[#allocation2] sm:$0xff]
    %v358 = vld [vmem:[#allocation2 + $0x8] sm:$0xff]
    %v361 = vcombine.high %v357, %v357
    %v362 = vcombine.high %v358, %v358
    %363 = vrot.lane.b32.xlu0 %v357, 91
    %v364 = vpop.permute.xlu0 %363
    %365 = vrot.lane.b32.xlu0 %v361, 91
    %v366 = vpop.permute.xlu0 %365
    %367 = vrot.lane.b32.xlu0 %v358, 91
    %v368 = vpop.permute.xlu0 %367
    %369 = vrot.lane.b32.xlu0 %v362, 91
    %v370 = vpop.permute.xlu0 %369
    %vm371 = vcmask 744448
    %v372 = vsel %vm371, %v364, %v366
    %v373 = vsel %vm371, %v368, %v370
    %376 = vst.msk [vmem:[#allocation3 + $0x40] sm:$0xf] %vm165, %v372
    %377 = vst.msk [vmem:[#allocation3 + $0xe8] sm:$0xf] %vm165, %v373
    %v378 = vld [vmem:[#allocation2] sm:$0xff]
    %v379 = vld [vmem:[#allocation2 + $0x8] sm:$0xff]
    %v382 = vcombine.high %v378, %v378
    %v383 = vcombine.high %v379, %v379
    %384 = vrot.lane.b32.xlu0 %v378, 90
    %v385 = vpop.permute.xlu0 %384
    %386 = vrot.lane.b32.xlu0 %v382, 90
    %v387 = vpop.permute.xlu0 %386
    %388 = vrot.lane.b32.xlu0 %v379, 90
    %v389 = vpop.permute.xlu0 %388
    %390 = vrot.lane.b32.xlu0 %v383, 90
    %v391 = vpop.permute.xlu0 %390
    %vm392 = vcmask 736256
    %v393 = vsel %vm392, %v385, %v387
    %v394 = vsel %vm392, %v389, %v391
    %397 = vst.msk [vmem:[#allocation3 + $0x44] sm:$0xf] %vm165, %v393
    %398 = vst.msk [vmem:[#allocation3 + $0xec] sm:$0xf] %vm165, %v394
    %v399 = vld [vmem:[#allocation2] sm:$0xff]
    %v400 = vld [vmem:[#allocation2 + $0x8] sm:$0xff]
    %v403 = vcombine.high %v399, %v399
    %v404 = vcombine.high %v400, %v400
    %405 = vrot.lane.b32.xlu0 %v399, 89
    %v406 = vpop.permute.xlu0 %405
    %407 = vrot.lane.b32.xlu0 %v403, 89
    %v408 = vpop.permute.xlu0 %407
    %409 = vrot.lane.b32.xlu0 %v400, 89
    %v410 = vpop.permute.xlu0 %409
    %411 = vrot.lane.b32.xlu0 %v404, 89
    %v412 = vpop.permute.xlu0 %411
    %vm413 = vcmask 728064
    %v414 = vsel %vm413, %v406, %v408
    %v415 = vsel %vm413, %v410, %v412
    %418 = vst.msk [vmem:[#allocation3 + $0x48] sm:$0xf] %vm165, %v414
    %419 = vst.msk [vmem:[#allocation3 + $0xf0] sm:$0xf] %vm165, %v415
    %v420 = vld [vmem:[#allocation2] sm:$0xff]
    %v421 = vld [vmem:[#allocation2 + $0x8] sm:$0xff]
    %v424 = vcombine.high %v420, %v420
    %v425 = vcombine.high %v421, %v421
    %426 = vrot.lane.b32.xlu0 %v420, 88
    %v427 = vpop.permute.xlu0 %426
    %428 = vrot.lane.b32.xlu0 %v424, 88
    %v429 = vpop.permute.xlu0 %428
    %430 = vrot.lane.b32.xlu0 %v421, 88
    %v431 = vpop.permute.xlu0 %430
    %432 = vrot.lane.b32.xlu0 %v425, 88
    %v433 = vpop.permute.xlu0 %432
    %vm434 = vcmask 719872
    %v435 = vsel %vm434, %v427, %v429
    %v436 = vsel %vm434, %v431, %v433
    %439 = vst.msk [vmem:[#allocation3 + $0x4c] sm:$0xf] %vm165, %v435
    %440 = vst.msk [vmem:[#allocation3 + $0xf4] sm:$0xf] %vm165, %v436
    %v441 = vld [vmem:[#allocation2] sm:$0xff]
    %v442 = vld [vmem:[#allocation2 + $0x8] sm:$0xff]
    %v445 = vcombine.high %v441, %v441
    %v446 = vcombine.high %v442, %v442
    %447 = vrot.lane.b32.xlu0 %v441, 80
    %v448 = vpop.permute.xlu0 %447
    %449 = vrot.lane.b32.xlu0 %v445, 80
    %v450 = vpop.permute.xlu0 %449
    %451 = vrot.lane.b32.xlu0 %v442, 80
    %v452 = vpop.permute.xlu0 %451
    %453 = vrot.lane.b32.xlu0 %v446, 80
    %v454 = vpop.permute.xlu0 %453
    %vm455 = vcmask 654336
    %v456 = vsel %vm455, %v448, %v450
    %v457 = vsel %vm455, %v452, %v454
    %460 = vst.msk [vmem:[#allocation3 + $0x50] sm:$0xf] %vm165, %v456
    %461 = vst.msk [vmem:[#allocation3 + $0xf8] sm:$0xf] %vm165, %v457
    %v462 = vld [vmem:[#allocation2] sm:$0xff]
    %v463 = vld [vmem:[#allocation2 + $0x8] sm:$0xff]
    %v466 = vcombine.high %v462, %v462
    %v467 = vcombine.high %v463, %v463
    %468 = vrot.lane.b32.xlu0 %v462, 79
    %v469 = vpop.permute.xlu0 %468
    %470 = vrot.lane.b32.xlu0 %v466, 79
    %v471 = vpop.permute.xlu0 %470
    %472 = vrot.lane.b32.xlu0 %v463, 79
    %v473 = vpop.permute.xlu0 %472
    %474 = vrot.lane.b32.xlu0 %v467, 79
    %v475 = vpop.permute.xlu0 %474
    %vm476 = vcmask 646144
    %v477 = vsel %vm476, %v469, %v471
    %v478 = vsel %vm476, %v473, %v475
    %481 = vst.msk [vmem:[#allocation3 + $0x54] sm:$0xf] %vm165, %v477
    %482 = vst.msk [vmem:[#allocation3 + $0xfc] sm:$0xf] %vm165, %v478
    %v483 = vld [vmem:[#allocation2] sm:$0xff]
    %v484 = vld [vmem:[#allocation2 + $0x8] sm:$0xff]
    %v487 = vcombine.high %v483, %v483
    %v488 = vcombine.high %v484, %v484
    %489 = vrot.lane.b32.xlu0 %v483, 78
    %v490 = vpop.permute.xlu0 %489
    %491 = vrot.lane.b32.xlu0 %v487, 78
    %v492 = vpop.permute.xlu0 %491
    %493 = vrot.lane.b32.xlu0 %v484, 78
    %v494 = vpop.permute.xlu0 %493
    %495 = vrot.lane.b32.xlu0 %v488, 78
    %v496 = vpop.permute.xlu0 %495
    %vm497 = vcmask 637952
    %v498 = vsel %vm497, %v490, %v492
    %v499 = vsel %vm497, %v494, %v496
    %502 = vst.msk [vmem:[#allocation3 + $0x58] sm:$0xf] %vm165, %v498
    %503 = vst.msk [vmem:[#allocation3 + $0x100] sm:$0xf] %vm165, %v499
    %v504 = vld [vmem:[#allocation2] sm:$0xff]
    %v505 = vld [vmem:[#allocation2 + $0x8] sm:$0xff]
    %v508 = vcombine.high %v504, %v504
    %v509 = vcombine.high %v505, %v505
    %510 = vrot.lane.b32.xlu0 %v504, 77
    %v511 = vpop.permute.xlu0 %510
    %512 = vrot.lane.b32.xlu0 %v508, 77
    %v513 = vpop.permute.xlu0 %512
    %514 = vrot.lane.b32.xlu0 %v505, 77
    %v515 = vpop.permute.xlu0 %514
    %516 = vrot.lane.b32.xlu0 %v509, 77
    %v517 = vpop.permute.xlu0 %516
    %vm518 = vcmask 629760
    %v519 = vsel %vm518, %v511, %v513
    %v520 = vsel %vm518, %v515, %v517
    %523 = vst.msk [vmem:[#allocation3 + $0x5c] sm:$0xf] %vm165, %v519
    %524 = vst.msk [vmem:[#allocation3 + $0x104] sm:$0xf] %vm165, %v520
    %v525 = vld [vmem:[#allocation2] sm:$0xff]
    %v526 = vld [vmem:[#allocation2 + $0x8] sm:$0xff]
    %v529 = vcombine.high %v525, %v525
    %v530 = vcombine.high %v526, %v526
    %531 = vrot.lane.b32.xlu0 %v525, 76
    %v532 = vpop.permute.xlu0 %531
    %533 = vrot.lane.b32.xlu0 %v529, 76
    %v534 = vpop.permute.xlu0 %533
    %535 = vrot.lane.b32.xlu0 %v526, 76
    %v536 = vpop.permute.xlu0 %535
    %537 = vrot.lane.b32.xlu0 %v530, 76
    %v538 = vpop.permute.xlu0 %537
    %vm539 = vcmask 621568
    %v540 = vsel %vm539, %v532, %v534
    %v541 = vsel %vm539, %v536, %v538
    %544 = vst.msk [vmem:[#allocation3 + $0x60] sm:$0xf] %vm165, %v540
    %545 = vst.msk [vmem:[#allocation3 + $0x108] sm:$0xf] %vm165, %v541
    %v546 = vld [vmem:[%s146] sm:$0xf]
    %v547 = vld [vmem:[%s146 + $0x8] sm:$0xf]
    %550 = vrot.lane.b32.xlu0 %v546, 115
    %v551 = vpop.permute.xlu0 %550
    %552 = vrot.lane.b32.xlu0 %v547, 115
    %v553 = vpop.permute.xlu0 %552
    %556 = vst.msk [vmem:[#allocation3 + $0x64] sm:$0xf] %vm165, %v551
    %557 = vst.msk [vmem:[#allocation3 + $0x10c] sm:$0xf] %vm165, %v553
    %v558 = vld [vmem:[%s146] sm:$0xf]
    %v559 = vld [vmem:[%s146 + $0x8] sm:$0xf]
    %562 = vrot.lane.b32.xlu0 %v558, 114
    %v563 = vpop.permute.xlu0 %562
    %564 = vrot.lane.b32.xlu0 %v559, 114
    %v565 = vpop.permute.xlu0 %564
    %568 = vst.msk [vmem:[#allocation3 + $0x68] sm:$0xf] %vm165, %v563
    %569 = vst.msk [vmem:[#allocation3 + $0x110] sm:$0xf] %vm165, %v565
    %v570 = vld [vmem:[%s146] sm:$0xf]
    %v571 = vld [vmem:[%s146 + $0x8] sm:$0xf]
    %574 = vrot.lane.b32.xlu0 %v570, 103
    %v575 = vpop.permute.xlu0 %574
    %576 = vrot.lane.b32.xlu0 %v571, 103
    %v577 = vpop.permute.xlu0 %576
    %580 = vst.msk [vmem:[#allocation3 + $0x6c] sm:$0xf] %vm165, %v575
    %581 = vst.msk [vmem:[#allocation3 + $0x114] sm:$0xf] %vm165, %v577
    %v582 = vld [vmem:[%s146] sm:$0xf]
    %v583 = vld [vmem:[%s146 + $0x8] sm:$0xf]
    %586 = vrot.lane.b32.xlu0 %v582, 102
    %v587 = vpop.permute.xlu0 %586
    %588 = vrot.lane.b32.xlu0 %v583, 102
    %v589 = vpop.permute.xlu0 %588
    %592 = vst.msk [vmem:[#allocation3 + $0x70] sm:$0xf] %vm165, %v587
    %593 = vst.msk [vmem:[#allocation3 + $0x118] sm:$0xf] %vm165, %v589
    %v594 = vld [vmem:[%s146] sm:$0xff]
    %v595 = vld [vmem:[%s146 + $0x8] sm:$0xff]
    %v598 = vcombine.high %v594, %v594
    %v599 = vcombine.high %v595, %v595
    %600 = vrot.lane.b32.xlu0 %v594, 91
    %v601 = vpop.permute.xlu0 %600
    %602 = vrot.lane.b32.xlu0 %v598, 91
    %v603 = vpop.permute.xlu0 %602
    %604 = vrot.lane.b32.xlu0 %v595, 91
    %v605 = vpop.permute.xlu0 %604
    %606 = vrot.lane.b32.xlu0 %v599, 91
    %v607 = vpop.permute.xlu0 %606
    %v608 = vsel %vm371, %v601, %v603
    %v609 = vsel %vm371, %v605, %v607
    %612 = vst.msk [vmem:[#allocation3 + $0x74] sm:$0xf] %vm165, %v608
    %613 = vst.msk [vmem:[#allocation3 + $0x11c] sm:$0xf] %vm165, %v609
    %v614 = vld [vmem:[%s146] sm:$0xff]
    %v615 = vld [vmem:[%s146 + $0x8] sm:$0xff]
    %v618 = vcombine.high %v614, %v614
    %v619 = vcombine.high %v615, %v615
    %620 = vrot.lane.b32.xlu0 %v614, 90
    %v621 = vpop.permute.xlu0 %620
    %622 = vrot.lane.b32.xlu0 %v618, 90
    %v623 = vpop.permute.xlu0 %622
    %624 = vrot.lane.b32.xlu0 %v615, 90
    %v625 = vpop.permute.xlu0 %624
    %626 = vrot.lane.b32.xlu0 %v619, 90
    %v627 = vpop.permute.xlu0 %626
    %v628 = vsel %vm392, %v621, %v623
    %v629 = vsel %vm392, %v625, %v627
    %632 = vst.msk [vmem:[#allocation3 + $0x78] sm:$0xf] %vm165, %v628
    %633 = vst.msk [vmem:[#allocation3 + $0x120] sm:$0xf] %vm165, %v629
    %v634 = vld [vmem:[%s153] sm:$0xf]
    %v635 = vld [vmem:[%s153 + $0x8] sm:$0xf]
    %638 = vrot.lane.b32.xlu0 %v634, 115
    %v639 = vpop.permute.xlu0 %638
    %640 = vrot.lane.b32.xlu0 %v635, 115
    %v641 = vpop.permute.xlu0 %640
    %644 = vst.msk [vmem:[#allocation3 + $0x7c] sm:$0xf] %vm165, %v639
    %645 = vst.msk [vmem:[#allocation3 + $0x124] sm:$0xf] %vm165, %v641
    %v646 = vld [vmem:[%s153] sm:$0xf]
    %v647 = vld [vmem:[%s153 + $0x8] sm:$0xf]
    %650 = vrot.lane.b32.xlu0 %v646, 114
    %v651 = vpop.permute.xlu0 %650
    %652 = vrot.lane.b32.xlu0 %v647, 114
    %v653 = vpop.permute.xlu0 %652
    %656 = vst.msk [vmem:[#allocation3 + $0x80] sm:$0xf] %vm165, %v651
    %657 = vst.msk [vmem:[#allocation3 + $0x128] sm:$0xf] %vm165, %v653
    %v658 = vld [vmem:[%s153] sm:$0xf]
    %v659 = vld [vmem:[%s153 + $0x8] sm:$0xf]
    %662 = vrot.lane.b32.xlu0 %v658, 113
    %v663 = vpop.permute.xlu0 %662
    %664 = vrot.lane.b32.xlu0 %v659, 113
    %v665 = vpop.permute.xlu0 %664
    %668 = vst.msk [vmem:[#allocation3 + $0x84] sm:$0xf] %vm165, %v663
    %669 = vst.msk [vmem:[#allocation3 + $0x12c] sm:$0xf] %vm165, %v665
    %v670 = vld [vmem:[%s153] sm:$0xf]
    %v671 = vld [vmem:[%s153 + $0x8] sm:$0xf]
    %674 = vrot.lane.b32.xlu0 %v670, 103
    %v675 = vpop.permute.xlu0 %674
    %676 = vrot.lane.b32.xlu0 %v671, 103
    %v677 = vpop.permute.xlu0 %676
    %680 = vst.msk [vmem:[#allocation3 + $0x88] sm:$0xf] %vm165, %v675
    %681 = vst.msk [vmem:[#allocation3 + $0x130] sm:$0xf] %vm165, %v677
    %v682 = vld [vmem:[%s153] sm:$0xf]
    %v683 = vld [vmem:[%s153 + $0x8] sm:$0xf]
    %686 = vrot.lane.b32.xlu0 %v682, 102
    %v687 = vpop.permute.xlu0 %686
    %688 = vrot.lane.b32.xlu0 %v683, 102
    %v689 = vpop.permute.xlu0 %688
    %692 = vst.msk [vmem:[#allocation3 + $0x8c] sm:$0xf] %vm165, %v687
    %693 = vst.msk [vmem:[#allocation3 + $0x134] sm:$0xf] %vm165, %v689
    %v694 = vld [vmem:[%s153] sm:$0xf]
    %v695 = vld [vmem:[%s153 + $0x8] sm:$0xf]
    %698 = vrot.lane.b32.xlu0 %v694, 101
    %v699 = vpop.permute.xlu0 %698
    %700 = vrot.lane.b32.xlu0 %v695, 101
    %v701 = vpop.permute.xlu0 %700
    %704 = vst.msk [vmem:[#allocation3 + $0x90] sm:$0xf] %vm165, %v699
    %705 = vst.msk [vmem:[#allocation3 + $0x138] sm:$0xf] %vm165, %v701
    %v706 = vld [vmem:[%s160] sm:$0xf]
    %v707 = vld [vmem:[%s160 + $0x8] sm:$0xf]
    %710 = vrot.lane.b32.xlu0 %v706, 115
    %v711 = vpop.permute.xlu0 %710
    %712 = vrot.lane.b32.xlu0 %v707, 115
    %v713 = vpop.permute.xlu0 %712
    %716 = vst.msk [vmem:[#allocation3 + $0x94] sm:$0xf] %vm165, %v711
    %717 = vst.msk [vmem:[#allocation3 + $0x13c] sm:$0xf] %vm165, %v713
    %v718 = vld [vmem:[%s160] sm:$0xf]
    %v719 = vld [vmem:[%s160 + $0x8] sm:$0xf]
    %722 = vrot.lane.b32.xlu0 %v718, 114
    %v723 = vpop.permute.xlu0 %722
    %724 = vrot.lane.b32.xlu0 %v719, 114
    %v725 = vpop.permute.xlu0 %724
    %728 = vst.msk [vmem:[#allocation3 + $0x98] sm:$0xf] %vm165, %v723
    %729 = vst.msk [vmem:[#allocation3 + $0x140] sm:$0xf] %vm165, %v725
    %v730 = vld [vmem:[%s160] sm:$0xf]
    %v731 = vld [vmem:[%s160 + $0x8] sm:$0xf]
    %734 = vrot.lane.b32.xlu0 %v730, 103
    %v735 = vpop.permute.xlu0 %734
    %736 = vrot.lane.b32.xlu0 %v731, 103
    %v737 = vpop.permute.xlu0 %736
    %740 = vst.msk [vmem:[#allocation3 + $0x9c] sm:$0xf] %vm165, %v735
    %741 = vst.msk [vmem:[#allocation3 + $0x144] sm:$0xf] %vm165, %v737
    %v742 = vld [vmem:[%s160] sm:$0xf]
    %v743 = vld [vmem:[%s160 + $0x8] sm:$0xf]
    %746 = vrot.lane.b32.xlu0 %v742, 102
    %v747 = vpop.permute.xlu0 %746
    %748 = vrot.lane.b32.xlu0 %v743, 102
    %v749 = vpop.permute.xlu0 %748
    %752 = vst.msk [vmem:[#allocation3 + $0xa0] sm:$0xf] %vm165, %v747
    %753 = vst.msk [vmem:[#allocation3 + $0x148] sm:$0xf] %vm165, %v749
    %v754 = vld [vmem:[%s5] sm:$0xff]
    %v755 = vld [vmem:[#allocation3] sm:$0xff]
    %v756 = vld [vmem:[#allocation3 + $0x8] sm:$0xff]
    %v757 = vld [vmem:[#allocation3 + $0x10] sm:$0xff]
    %v758 = vld [vmem:[#allocation3 + $0x18] sm:$0xff]
    %v759 = vld [vmem:[#allocation3 + $0x20] sm:$0xff]
    %v760 = vld [vmem:[#allocation3 + $0x28] sm:$0xff]
    %v761 = vld [vmem:[#allocation3 + $0x30] sm:$0xff]
    %v762 = vld [vmem:[#allocation3 + $0x38] sm:$0xff]
    %v763 = vld [vmem:[#allocation3 + $0x40] sm:$0xff]
    %v764 = vld [vmem:[#allocation3 + $0x48] sm:$0xff]
    %v765 = vld [vmem:[#allocation3 + $0x50] sm:$0xff]
    %v766 = vld [vmem:[#allocation3 + $0x58] sm:$0xff]
    %v767 = vld [vmem:[#allocation3 + $0x60] sm:$0xff]
    %v768 = vld [vmem:[#allocation3 + $0x68] sm:$0xff]
    %v769 = vld [vmem:[#allocation3 + $0x70] sm:$0xff]
    %v770 = vld [vmem:[#allocation3 + $0x78] sm:$0xff]
    %v771 = vld [vmem:[#allocation3 + $0x80] sm:$0xff]
    %v772 = vld [vmem:[#allocation3 + $0x88] sm:$0xff]
    %v773 = vld [vmem:[#allocation3 + $0x90] sm:$0xff]
    %v774 = vld [vmem:[#allocation3 + $0x98] sm:$0xff]
    %v775 = vld [vmem:[#allocation3 + $0xa0] sm:$0xf]
    %v776 = vld [vmem:[#allocation3 + $0xa8] sm:$0xff]
    %v777 = vld [vmem:[#allocation3 + $0xb0] sm:$0xff]
    %v778 = vld [vmem:[#allocation3 + $0xb8] sm:$0xff]
    %v779 = vld [vmem:[#allocation3 + $0xc0] sm:$0xff]
    %v780 = vld [vmem:[#allocation3 + $0xc8] sm:$0xff]
    %v781 = vld [vmem:[#allocation3 + $0xd0] sm:$0xff]
    %v782 = vld [vmem:[#allocation3 + $0xd8] sm:$0xff]
    %v783 = vld [vmem:[#allocation3 + $0xe0] sm:$0xff]
    %v784 = vld [vmem:[#allocation3 + $0xe8] sm:$0xff]
    %v785 = vld [vmem:[#allocation3 + $0xf0] sm:$0xff]
    %v786 = vld [vmem:[#allocation3 + $0xf8] sm:$0xff]
    %v787 = vld [vmem:[#allocation3 + $0x100] sm:$0xff]
    %v788 = vld [vmem:[#allocation3 + $0x108] sm:$0xff]
    %v789 = vld [vmem:[#allocation3 + $0x110] sm:$0xff]
    %v790 = vld [vmem:[#allocation3 + $0x118] sm:$0xff]
    %v791 = vld [vmem:[#allocation3 + $0x120] sm:$0xff]
    %v792 = vld [vmem:[#allocation3 + $0x128] sm:$0xff]
    %v793 = vld [vmem:[#allocation3 + $0x130] sm:$0xff]
    %v794 = vld [vmem:[#allocation3 + $0x138] sm:$0xff]
    %v795 = vld [vmem:[#allocation3 + $0x140] sm:$0xff]
    %v796 = vld [vmem:[#allocation3 + $0x148] sm:$0xf]
    %v798 = vcombine.high %v754, %v754
    %vm799 = vcmask 293888
    %v800 = vsel %vm799, %v798, 0
    %v803 = vsel %vm137, %v775, 0
    %805 = vmatprep.subr.mxu0 0.0
    %806 = vmatpush1.msra.mxu0 %v770
    %807 = vmatprep.subr.mxu0 0.0
    %808 = vmatpush1.msra.mxu0 %v769
    %809 = vmatprep.subr.mxu0 0.0
    %810 = vmatpush1.msra.mxu0 %v768
    %811 = vmatprep.subr.mxu0 0.0
    %812 = vmatpush1.msra.mxu0 %v767
    %813 = vmatprep.subr.mxu0 0.0
    %814 = vmatpush1.msra.mxu0 %v766
    %815 = vmatprep.subr.mxu0 0.0
    %816 = vmatpush1.msra.mxu0 %v765
    %817 = vmatprep.subr.mxu0 0.0
    %818 = vmatpush1.msra.mxu0 %v764
    %819 = vmatprep.subr.mxu0 0.0
    %820 = vmatpush1.msra.mxu0 %v763
    %821 = vmatprep.subr.mxu0 0.0
    %822 = vmatpush1.msra.mxu0 %v762
    %823 = vmatprep.subr.mxu0 0.0
    %824 = vmatpush1.msra.mxu0 %v761
    %825 = vmatprep.subr.mxu0 0.0
    %826 = vmatpush1.msra.mxu0 %v760
    %827 = vmatprep.subr.mxu0 0.0
    %828 = vmatpush1.msra.mxu0 %v759
    %829 = vmatprep.subr.mxu0 0.0
    %830 = vmatpush1.msra.mxu0 %v758
    %831 = vmatprep.subr.mxu0 0.0
    %832 = vmatpush1.msra.mxu0 %v757
    %833 = vmatprep.subr.mxu0 0.0
    %834 = vmatpush1.msra.mxu0 %v756
    %835 = vmatprep.subr.mxu0 0.0
    %836 = vmatpush1.msra.mxu0 %v755
    %837 = vmatprep.subr.mxu0 0.0
    %838 = vmatpush2.msra.mxu0 0.0
    %839 = vmatprep.subr.mxu0 0.0
    %840 = vmatpush2.msra.mxu0 0.0
    %841 = vmatprep.subr.mxu0 0.0
    %842 = vmatpush2.msra.mxu0 0.0
    %843 = vmatprep.subr.mxu0 0.0
    %844 = vmatpush2.msra.mxu0 0.0
    %845 = vmatprep.subr.mxu0 0.0
    %846 = vmatpush2.msra.mxu0 0.0
    %847 = vmatprep.subr.mxu0 0.0
    %848 = vmatpush2.msra.mxu0 0.0
    %849 = vmatprep.subr.mxu0 0.0
    %850 = vmatpush2.msra.mxu0 0.0
    %851 = vmatprep.subr.mxu0 0.0
    %852 = vmatpush2.msra.mxu0 0.0
    %853 = vmatprep.subr.mxu0 0.0
    %854 = vmatpush2.msra.mxu0 0.0
    %855 = vmatprep.subr.mxu0 0.0
    %856 = vmatpush2.msra.mxu0 0.0
    %857 = vmatprep.subr.mxu0 0.0
    %858 = vmatpush2.msra.mxu0 0.0
    %859 = vmatprep.subr.mxu0 0.0
    %860 = vmatpush2.msra.mxu0 %v803
    %861 = vmatprep.subr.mxu0 0.0
    %862 = vmatpush2.msra.mxu0 %v774
    %863 = vmatprep.subr.mxu0 0.0
    %864 = vmatpush2.msra.mxu0 %v773
    %865 = vmatprep.subr.mxu0 0.0
    %866 = vmatpush2.msra.mxu0 %v772
    %867 = vmatprep.subr.mxu0 0.0
    %868 = vmatpush2.msra.mxu0 %v771
    %869 = vmatprep.mubr.f32.mxu0 %v800
    %870 = vmatmul.mubr.f32.gmra.mxu0 %v754
    %v871 = vpop.f32.mrf.mxu0
    %v872 = vadd.f32 0.0, %v871
    %v873 = vpop.f32.mrf.mxu0
    %874 = vdwg.mxu0
    %v876 = vsel %vm137, %v796, 0
    %878 = vmatprep.subr.mxu0 0.0
    %879 = vmatpush1.msra.mxu0 %v791
    %880 = vmatprep.subr.mxu0 0.0
    %881 = vmatpush1.msra.mxu0 %v790
    %882 = vmatprep.subr.mxu0 0.0
    %883 = vmatpush1.msra.mxu0 %v789
    %884 = vmatprep.subr.mxu0 0.0
    %885 = vmatpush1.msra.mxu0 %v788
    %886 = vmatprep.subr.mxu0 0.0
    %887 = vmatpush1.msra.mxu0 %v787
    %888 = vmatprep.subr.mxu0 0.0
    %889 = vmatpush1.msra.mxu0 %v786
    %890 = vmatprep.subr.mxu0 0.0
    %891 = vmatpush1.msra.mxu0 %v785
    %892 = vmatprep.subr.mxu0 0.0
    %893 = vmatpush1.msra.mxu0 %v784
    %894 = vmatprep.subr.mxu0 0.0
    %895 = vmatpush1.msra.mxu0 %v783
    %896 = vmatprep.subr.mxu0 0.0
    %897 = vmatpush1.msra.mxu0 %v782
    %898 = vmatprep.subr.mxu0 0.0
    %899 = vmatpush1.msra.mxu0 %v781
    %900 = vmatprep.subr.mxu0 0.0
    %901 = vmatpush1.msra.mxu0 %v780
    %902 = vmatprep.subr.mxu0 0.0
    %903 = vmatpush1.msra.mxu0 %v779
    %904 = vmatprep.subr.mxu0 0.0
    %905 = vmatpush1.msra.mxu0 %v778
    %906 = vmatprep.subr.mxu0 0.0
    %907 = vmatpush1.msra.mxu0 %v777
    %908 = vmatprep.subr.mxu0 0.0
    %909 = vmatpush1.msra.mxu0 %v776
    %910 = vmatprep.subr.mxu0 0.0
    %911 = vmatpush2.msra.mxu0 0.0
    %912 = vmatprep.subr.mxu0 0.0
    %913 = vmatpush2.msra.mxu0 0.0
    %914 = vmatprep.subr.mxu0 0.0
    %915 = vmatpush2.msra.mxu0 0.0
    %916 = vmatprep.subr.mxu0 0.0
    %917 = vmatpush2.msra.mxu0 0.0
    %918 = vmatprep.subr.mxu0 0.0
    %919 = vmatpush2.msra.mxu0 0.0
    %920 = vmatprep.subr.mxu0 0.0
    %921 = vmatpush2.msra.mxu0 0.0
    %922 = vmatprep.subr.mxu0 0.0
    %923 = vmatpush2.msra.mxu0 0.0
    %924 = vmatprep.subr.mxu0 0.0
    %925 = vmatpush2.msra.mxu0 0.0
    %926 = vmatprep.subr.mxu0 0.0
    %927 = vmatpush2.msra.mxu0 0.0
    %928 = vmatprep.subr.mxu0 0.0
    %929 = vmatpush2.msra.mxu0 0.0
    %930 = vmatprep.subr.mxu0 0.0
    %931 = vmatpush2.msra.mxu0 0.0
    %932 = vmatprep.subr.mxu0 0.0
    %933 = vmatpush2.msra.mxu0 %v876
    %934 = vmatprep.subr.mxu0 0.0
    %935 = vmatpush2.msra.mxu0 %v795
    %936 = vmatprep.subr.mxu0 0.0
    %937 = vmatpush2.msra.mxu0 %v794
    %938 = vmatprep.subr.mxu0 0.0
    %939 = vmatpush2.msra.mxu0 %v793
    %940 = vmatprep.subr.mxu0 0.0
    %941 = vmatpush2.msra.mxu0 %v792
    %942 = vmatprep.mubr.f32.mxu0 %v800
    %943 = vmatmul.mubr.f32.gmra.mxu0 %v754
    %v944 = vpop.f32.mrf.mxu0
    %v945 = vadd.f32 0.0, %v944
    %v946 = vpop.f32.mrf.mxu0
    %947 = vdwg.mxu0
    %950 = vrot.lane.b32.xlu0 %v872, 26
    %v951 = vpop.permute.xlu0 %950
    %952 = vrot.lane.b32.xlu0 %v945, 26
    %v953 = vpop.permute.xlu0 %952
    %v956 = vadd.f32 %v131, %v951
    %v957 = vadd.f32 %v132, %v953
    %960 = vrot.lane.b32.xlu0 %v956, 102
    %v961 = vpop.permute.xlu0 %960
    %962 = vrot.lane.b32.xlu0 %v957, 102
    %v963 = vpop.permute.xlu0 %962
    %vm966 = vcmask 60416
    %967 = vst.msk [vmem:[#allocation14] sm:$0xf] %vm966, %v961
    %968 = vst.msk [vmem:[#allocation14 + $0x4] sm:$0xf] %vm966, %v963
    %969 = vrot.lane.b32.xlu0 %v956, 98
    %v970 = vpop.permute.xlu0 %969
    %971 = vrot.lane.b32.xlu0 %v957, 98
    %v972 = vpop.permute.xlu0 %971
    %vm975 = vcmask 126016
    %976 = vst.msk [vmem:[#allocation14] sm:$0xf] %vm975, %v970
    %977 = vst.msk [vmem:[#allocation14 + $0x4] sm:$0xf] %vm975, %v972
    %978 = vrot.lane.b32.xlu0 %v956, 94
    %v979 = vpop.permute.xlu0 %978
    %980 = vrot.lane.b32.xlu0 %v957, 94
    %v981 = vpop.permute.xlu0 %980
    %vm984 = vcmask 191616
    %985 = vst.msk [vmem:[#allocation14] sm:$0xf] %vm984, %v979
    %986 = vst.msk [vmem:[#allocation14 + $0x4] sm:$0xf] %vm984, %v981
    %987 = vrot.lane.b32.xlu0 %v956, 90
    %v988 = vpop.permute.xlu0 %987
    %989 = vrot.lane.b32.xlu0 %v957, 90
    %v990 = vpop.permute.xlu0 %989
    %vm993 = vcmask 257216
    %994 = vst.msk [vmem:[#allocation14] sm:$0xf] %vm993, %v988
    %995 = vst.msk [vmem:[#allocation14 + $0x4] sm:$0xf] %vm993, %v990
    %996 = vrot.lane.b32.xlu0 %v956, 86
    %v997 = vpop.permute.xlu0 %996
    %998 = vrot.lane.b32.xlu0 %v957, 86
    %v999 = vpop.permute.xlu0 %998
    %vm1002 = vcmask 322816
    %1003 = vst.msk [vmem:[#allocation14] sm:$0xf] %vm1002, %v997
    %1004 = vst.msk [vmem:[#allocation14 + $0x4] sm:$0xf] %vm1002, %v999
    %1005 = vrot.lane.b32.xlu0 %v956, 82
    %v1006 = vpop.permute.xlu0 %1005
    %1007 = vrot.lane.b32.xlu0 %v957, 82
    %v1008 = vpop.permute.xlu0 %1007
    %vm1011 = vcmask 388416
    %1012 = vst.msk [vmem:[#allocation14] sm:$0xf] %vm1011, %v1006
    %1013 = vst.msk [vmem:[#allocation14 + $0x4] sm:$0xf] %vm1011, %v1008
    %1014 = vrot.lane.b32.xlu0 %v956, 78
    %v1015 = vpop.permute.xlu0 %1014
    %1016 = vrot.lane.b32.xlu0 %v957, 78
    %v1017 = vpop.permute.xlu0 %1016
    %vm1020 = vcmask 454016
    %1021 = vst.msk [vmem:[#allocation14] sm:$0xf] %vm1020, %v1015
    %1022 = vst.msk [vmem:[#allocation14 + $0x4] sm:$0xf] %vm1020, %v1017
    %1023 = vrot.lane.b32.xlu0 %v956, 74
    %v1024 = vpop.permute.xlu0 %1023
    %1025 = vrot.lane.b32.xlu0 %v957, 74
    %v1026 = vpop.permute.xlu0 %1025
    %vm1029 = vcmask 519616
    %1030 = vst.msk [vmem:[#allocation14] sm:$0xf] %vm1029, %v1024
    %1031 = vst.msk [vmem:[#allocation14 + $0x4] sm:$0xf] %vm1029, %v1026
    // Predicated region
    $region50: #{tpu_custom_call.1} parent=1 // pred_check
      _
    $region51: #{tpu_custom_call.1} parent=1 // pred_check_branch
      %1033 = sbr.rel (0) target = $region53
    $region52: #{tpu_custom_call.1} parent=1 // pred_region
      %s1035 = ssub.s32 128, 128
      %1036 = vsyncadd [#allocation6], %s1035
      %s1037 = sshll.u32 [#allocation14], 4
      %s1038 = int_to_ptr.vmem [resolvable:$true] %s1037
      %1043 = dma.vmem_to_hbm [thread:$0]  %s1038, 128, %s7, [#allocation6], 64, 64, 4
    $region53: #{tpu_custom_call.1} parent=1 // pred_fallthru
      _
    // Predicated region
    $region54: #{tpu_custom_call.1} parent=1 // pred_check
      _
    $region55: #{tpu_custom_call.1} parent=1 // pred_check_branch
      %1045 = sbr.rel (0) target = $region57
    $region56: #{tpu_custom_call.1} parent=1 // pred_region
      %1046 = dma.done [#allocation6], 128
    $region57: #{tpu_custom_call.1} parent=1 // pred_fallthru
      _
    %1047 = vsyncpa [#allocation5], 1
    %1048 = vsyncpa [#allocation10], 1
    %1049 = vsyncpa [#allocation13], 1
    %1050 = vsyncpa [#allocation6], 1
    %1051 = vsyncpa [#allocation7], 1

</llo_original>
